<compile_context>
chip_gen: v7x
topology: tpu7x:2x2x1
jax: 0.10.0
libtpu: 0.0.40
codegen_flags: <defaults>
</compile_context>

<pallas_src>
import functools

import jax
import jax.numpy as jnp
from jax.experimental import pallas as pl
from jax.experimental.pallas import tpu as pltpu


def _round_up(x, m):
    return -(-x // m) * m


def _vmem_limit_bytes(est_bytes):
    # Explicit scoped-VMEM budget: at least the 32 MiB default, never more
    # than v7x's 64 MiB physical VMEM.  (For the demo sizes this is 32 MiB,
    # i.e. identical to the default.)
    return int(min(max(est_bytes + (4 << 20), 32 << 20), 64 << 20))


def _pick_group(B, L, target_rows=256):
    """Pick how many sequences to process per grid step so the conv matmul's
    M dim (G*L) reaches MXU width (>=256 rows covers v5e/v6e/v7x)."""
    G = max(1, min(B, target_rows // max(L, 1)))
    while B % G:          # keep the grid exact (G must divide B)
        G -= 1
    return G


# ----------------------------------------------------------------------------
# Fused residual-block stack kernel.
# One grid step = G batch elements; the Python loop over blocks is unrolled
# inside the kernel so the activation never leaves VMEM between blocks.
# ----------------------------------------------------------------------------
def _fused_blocks_kernel(x_ref, w1_ref, w2_ref, v_ref, o_ref, pad_ref,
                         *, k, dilations, G, L, C, maxpad, eps):
    # Zero the causal-padding rows.  They are never written anywhere else, so
    # zeroing once per core would suffice, but there is no portable
    # "first step on this core" predicate once the "parallel" batch axis is
    # sharded across TensorCores (v7x megacore), so we pay the tiny
    # G*maxpad*C bf16 store every step instead of a pl.when(pid==0) guard.
    pad_ref[:, 0:maxpad, :] = jnp.zeros((G, maxpad, C), jnp.bfloat16)

    # Residual path stays f32; matmul operands are bf16.
    cur = x_ref[...].astype(jnp.float32).reshape(G * L, C)

    def causal_conv(inp, w_taps, bias, dil):
        # Stage the conv input once (bf16) behind `maxpad` zero rows; the k
        # dilated causal taps are then plain static slices of the scratch and
        # feed k accumulating MXU matmuls (bf16 x bf16 -> f32 accumulate).
        inp_bf = inp.astype(jnp.bfloat16)
        pad_ref[:, maxpad:maxpad + L, :] = inp_bf.reshape(G, L, C)
        acc = None
        for j in range(k):
            shift = (k - 1 - j) * dil
            if shift == 0:
                tap = inp_bf                                  # (G*L, C)
            else:
                start = maxpad - shift
                tap = pad_ref[:, start:start + L, :].reshape(G * L, C)
            d = jnp.dot(tap, w_taps[j], preferred_element_type=jnp.float32)
            acc = d if acc is None else acc + d
        return acc + bias                                     # bias: (1, C)

    def ln_relu_gate(h, g, bt, gc):
        mean = jnp.mean(h, axis=-1, keepdims=True)
        var = jnp.mean(jnp.square(h - mean), axis=-1, keepdims=True)
        hn = (h - mean) * jax.lax.rsqrt(var + eps)
        hn = hn * g + bt
        hn = jnp.maximum(hn, 0.0)
        return hn * gc

    # NOTE: for very deep stacks this per-block Python loop could become a
    # lax.fori_loop (dynamic w1_ref/w2_ref/v_ref indexing) to bound vreg live
    # ranges; fully unrolled is fine at typical n_blocks.
    for bi, dil in enumerate(dilations):
        v = v_ref[bi]                                         # (8, C) f32
        b1, g1, bt1, gc1 = v[0:1], v[1:2], v[2:3], v[3:4]
        b2, g2, bt2, gc2 = v[4:5], v[5:6], v[6:7], v[7:8]

        h1 = ln_relu_gate(causal_conv(cur, w1_ref[bi], b1, dil),
                          g1, bt1, gc1)
        h2 = ln_relu_gate(causal_conv(h1, w2_ref[bi], b2, 2 * dil),
                          g2, bt2, gc2)
        cur = h2 + cur                                        # residual

    o_ref[...] = cur.reshape(G, L, C).astype(o_ref.dtype)


def fused_residual_blocks(x, w1_all, w2_all, v_all, *, k, dilations):
    B, L, C = x.shape
    n_blocks = len(dilations)
    raw_pad = (k - 1) * 2 * max(dilations)
    # bf16 staging scratch packs 2 rows/sublane -> keep the write offset
    # 16-row aligned for unmasked stores.
    maxpad = max(16, _round_up(raw_pad, 16))
    G = _pick_group(B, L)

    kern = functools.partial(_fused_blocks_kernel, k=k,
                             dilations=tuple(dilations), G=G, L=L, C=C,
                             maxpad=maxpad, eps=1e-8)

    act_spec = pl.BlockSpec((G, L, C), lambda b: (b, 0, 0))
    w_spec = pl.BlockSpec((n_blocks, k, C, C), lambda b: (0, 0, 0, 0))
    v_spec = pl.BlockSpec((n_blocks, 8, C), lambda b: (0, 0, 0))

    # Rough double-buffered footprint (weights have a constant index_map so
    # their DMA is skipped after step 0, but buffers are still allocated).
    est = (2 * (G * L * C * 4            # f32 input block
                + G * L * C * 2          # bf16 output block
                + 2 * n_blocks * k * C * C * 2   # bf16 conv weights
                + n_blocks * 8 * C * 4)  # f32 vector pack
           + G * (maxpad + L) * C * 2)   # bf16 staging scratch

    return pl.pallas_call(
        kern,
        out_shape=jax.ShapeDtypeStruct((B, L, C), jnp.bfloat16),
        grid=(B // G,),
        in_specs=[act_spec, w_spec, w_spec, v_spec],
        out_specs=act_spec,
        scratch_shapes=[pltpu.VMEM((G, maxpad + L, C), jnp.bfloat16)],
        compiler_params=pltpu.CompilerParams(
            dimension_semantics=("parallel",),
            vmem_limit_bytes=_vmem_limit_bytes(est)),
    )(x, w1_all, w2_all, v_all)


# ----------------------------------------------------------------------------
# Fused, lane-dense, tiled linear head(s): out = hidden @ [W_1|W_2|...] + b
# Weight concat / lane padding / bf16 cast is hoisted to prepare time.
# ----------------------------------------------------------------------------
def _fused_linear_kernel(h_ref, w_ref, b_ref, o_ref):
    acc = jnp.dot(h_ref[...], w_ref[...], preferred_element_type=jnp.float32)
    o_ref[...] = (acc + b_ref[...]).astype(o_ref.dtype)


def prepare_head(weights, biases):
    """Concatenate head weights along the output dim, pad lane-dense, cast to
    bf16 — done once, not per forward call."""
    sizes = tuple(int(w.shape[1]) for w in weights)
    O = sum(sizes)
    w_cat = jnp.concatenate(list(weights), axis=1)                 # [C, O]
    b_cat = jnp.concatenate([b.reshape(1, -1) for b in biases], axis=1)
    if O >= 1024:
        o_align = 1024
    elif O >= 512:
        o_align = 512
    else:
        o_align = 128
    O_pad = _round_up(O, o_align)
    o_tile = o_align if O >= 512 else O_pad
    if O_pad != O:
        w_cat = jnp.pad(w_cat, ((0, 0), (0, O_pad - O)))
        b_cat = jnp.pad(b_cat, ((0, 0), (0, O_pad - O)))
    return dict(w=w_cat.astype(jnp.bfloat16), b=b_cat.astype(jnp.float32),
                sizes=sizes, O=O, O_pad=O_pad, o_tile=int(o_tile))


def fused_linear(hidden, head):
    """Compute hidden @ W_i + b_i for every head i with a single kernel."""
    hidden = hidden.astype(jnp.bfloat16)        # no-op: blocks already emit bf16
    N, C = hidden.shape
    O, O_pad, o_tile, sizes = head["O"], head["O_pad"], head["o_tile"], head["sizes"]

    # Large row tiles cut how often the [C, O] head weight is re-streamed
    # from HBM (the dominant traffic on bandwidth-poor v5e/v6e).
    if N >= 2048:
        row_tile = 1024
    elif N >= 512:
        row_tile = 512
    else:
        row_tile = _round_up(N, 8)
    N_pad = _round_up(N, row_tile)
    h = hidden if N_pad == N else jnp.pad(hidden, ((0, N_pad - N), (0, 0)))

    est = 2 * (row_tile * C * 2 + C * o_tile * 2 + o_tile * 4
               + row_tile * o_tile * 4)

    out = pl.pallas_call(
        _fused_linear_kernel,
        out_shape=jax.ShapeDtypeStruct((N_pad, O_pad), jnp.float32),
        grid=(N_pad // row_tile, O_pad // o_tile),
        in_specs=[pl.BlockSpec((row_tile, C), lambda i, j: (i, 0)),
                  pl.BlockSpec((C, o_tile), lambda i, j: (0, j)),
                  pl.BlockSpec((1, o_tile), lambda i, j: (0, j))],
        out_specs=pl.BlockSpec((row_tile, o_tile), lambda i, j: (i, j)),
        compiler_params=pltpu.CompilerParams(
            dimension_semantics=("parallel", "parallel"),
            vmem_limit_bytes=_vmem_limit_bytes(est)),
    )(h, head["w"], head["b"])

    outs, off = [], 0
    for sz in sizes:
        outs.append(out[:N, off:off + sz])
        off += sz
    return outs


# ----------------------------------------------------------------------------
# attn_fmask / mask glue (tiny [2T-1, C] compute) — plain JAX
# ----------------------------------------------------------------------------
def _attn_mask_one(ec, mlp_w, mlp_b, t, s, num_task):
    rows = [ec[t][None, :]]
    for i in range(num_task):
        if i != t:
            rows.append(ec[i][None, :])
            rows.append(-ec[i][None, :])
    new_emb = jnp.concatenate(rows, axis=0)                 # [2T-1, C]
    attn = (jnp.tanh(s * new_emb).T @ mlp_w.T + mlp_b).T    # [1, C]
    return jax.nn.sigmoid(s * attn)                         # [1, C]


def _plain_mask_one(ec, t, s):
    return jax.nn.sigmoid(s * ec[t][None, :])               # [1, C]


# ----------------------------------------------------------------------------
# One-time preparation of parameter-derived, call-invariant tensors
# ----------------------------------------------------------------------------
def prepare_decoder(params, mp):
    w1_all = jnp.stack([b["w1"] for b in params["blocks"]]).astype(jnp.bfloat16)
    w2_all = jnp.stack([b["w2"] for b in params["blocks"]]).astype(jnp.bfloat16)
    head_fwd = prepare_head(
        [params["final_w"], params["past_final_w"]],
        [params["final_b"], params["past_final_b"]])
    head_bwd = [prepare_head([w], [b]) for (w, b) in params["one_layer"]]
    return dict(w1_all=w1_all, w2_all=w2_all,
                head_fwd=head_fwd, head_bwd=head_bwd)


# ----------------------------------------------------------------------------
# Full decoder forward
# ----------------------------------------------------------------------------
def nextitnet_decoder_forward(params, static, x, s, task_num, *, model_para,
                              onecall=False, backward=False, current_task=2):
    mp = model_para
    C = mp["dilated_channels"]      # NOTE: choose as a multiple of 128 for
    k = mp["kernel_size"]           # lane-dense VPU/MXU/store utilization.
    T = mp["num_task"]
    dilations = tuple(mp["dilations"])
    n_blocks = len(dilations)

    inputs = params["embedding"][x]                         # [B, L, C]

    masks_list = []
    v_list = []
    for bi in range(n_blocks):
        bp = params["blocks"][bi]
        # mirrors ResidualBlock.forward mask-selection logic
        if (task_num == current_task) or (current_task != 1) or backward:
            gc1 = _attn_mask_one(bp["ec1"], bp["mlp1_w"][task_num],
                                 bp["mlp1_b"][task_num], task_num, s, T)
            gc2 = _attn_mask_one(bp["ec2"], bp["mlp2_w"][task_num],
                                 bp["mlp2_b"][task_num], task_num, s, T)
        else:
            gc1 = _plain_mask_one(bp["ec1"], task_num, s)
            gc2 = _plain_mask_one(bp["ec2"], task_num, s)
        masks_list += [gc1, gc2]
        v_list.append(jnp.concatenate(
            [bp["b1"], bp["ln1_g"], bp["ln1_b"], gc1,
             bp["b2"], bp["ln2_g"], bp["ln2_b"], gc2], axis=0))   # [8, C]

    v_all = jnp.stack(v_list).astype(jnp.float32)           # [n_blocks, 8, C]

    out = fused_residual_blocks(inputs, static["w1_all"], static["w2_all"],
                                v_all, k=k, dilations=dilations)

    if onecall:
        hidden = out[:, -1, :]                               # [B, C] bf16
    else:
        hidden = out.reshape(-1, C)                          # [B*L, C] bf16

    if backward:
        (o,) = fused_linear(hidden, static["head_bwd"][task_num])
        return o, 0, masks_list
    else:
        o1, o2 = fused_linear(hidden, static["head_fwd"])
        return o1, o2, masks_list


# ----------------------------------------------------------------------------
# Pure-JAX reference (for a sanity check of the fused kernels)
# ----------------------------------------------------------------------------
def _reference_forward(params, inputs, s, task_num, mp, current_task, backward):
    C = mp["dilated_channels"]
    k = mp["kernel_size"]
    T = mp["num_task"]
    out = inputs
    for bi, d in enumerate(mp["dilations"]):
        bp = params["blocks"][bi]
        if (task_num == current_task) or (current_task != 1) or backward:
            gc1 = _attn_mask_one(bp["ec1"], bp["mlp1_w"][task_num],
                                 bp["mlp1_b"][task_num], task_num, s, T)
            gc2 = _attn_mask_one(bp["ec2"], bp["mlp2_w"][task_num],
                                 bp["mlp2_b"][task_num], task_num, s, T)
        else:
            gc1 = _plain_mask_one(bp["ec1"], task_num, s)
            gc2 = _plain_mask_one(bp["ec2"], task_num, s)

        def conv(inp, w, b, dil):
            L = inp.shape[1]
            acc = jnp.zeros_like(inp)
            for j in range(k):
                shift = (k - 1 - j) * dil
                shifted = jnp.pad(inp, ((0, 0), (shift, 0), (0, 0)))[:, :L, :]
                acc = acc + jnp.einsum("blc,cd->bld", shifted, w[j])
            return acc + b[0]

        def ln_relu_gate(h, g, bt, gc):
            mean = jnp.mean(h, axis=-1, keepdims=True)
            var = jnp.mean((h - mean) ** 2, axis=-1, keepdims=True)
            hn = (h - mean) / jnp.sqrt(var + 1e-8) * g[0] + bt[0]
            return jnp.maximum(hn, 0.0) * gc[0]

        h1 = ln_relu_gate(conv(out, bp["w1"], bp["b1"], d),
                          bp["ln1_g"], bp["ln1_b"], gc1)
        h2 = ln_relu_gate(conv(h1, bp["w2"], bp["b2"], 2 * d),
                          bp["ln2_g"], bp["ln2_b"], gc2)
        out = h2 + out
    hidden = out.reshape(-1, C)
    o1 = hidden @ params["final_w"] + params["final_b"]
    o2 = hidden @ params["past_final_w"] + params["past_final_b"]
    return o1, o2


# ----------------------------------------------------------------------------
# Deterministic parameter initialization (matches __init__ shapes)
# ----------------------------------------------------------------------------
def init_params(key, mp):
    C = mp["dilated_channels"]
    k = mp["kernel_size"]
    T = mp["num_task"]
    item = mp["item_size"]
    lo, hi = mp["task_embs"]
    keys = iter(jax.random.split(key, 64))

    def nxt():
        return next(keys)

    stdv = (1.0 / item) ** 0.5
    params = {
        "embedding": jax.random.uniform(nxt(), (item, C), jnp.float32,
                                        -stdv, stdv),
    }
    blocks = []
    for _dil in mp["dilations"]:
        bound = (1.0 / (C * k)) ** 0.5
        blk = {
            # conv weights stored as [k, C_in, C_out] (transposed taps of the
            # PyTorch [C_out, C_in, 1, k] Conv2d weight)
            "w1": jax.random.uniform(nxt(), (k, C, C), jnp.float32,
                                     -bound, bound),
            "b1": jax.random.uniform(nxt(), (1, C), jnp.float32,
                                     -bound, bound),
            "ln1_g": jnp.ones((1, C), jnp.float32),
            "ln1_b": jnp.zeros((1, C), jnp.float32),
            "w2": jax.random.uniform(nxt(), (k, C, C), jnp.float32,
                                     -bound, bound),
            "b2": jax.random.uniform(nxt(), (1, C), jnp.float32,
                                     -bound, bound),
            "ln2_g": jnp.ones((1, C), jnp.float32),
            "ln2_b": jnp.zeros((1, C), jnp.float32),
            "ec1": jax.random.uniform(nxt(), (6, C), jnp.float32,
                                      float(lo), float(hi)),
            "ec2": jax.random.uniform(nxt(), (6, C), jnp.float32,
                                      float(lo), float(hi)),
            "mlp1_w": [0.01 * jax.random.normal(nxt(), (1, 2 * T - 1),
                                                jnp.float32)
                       for _ in range(T)],
            "mlp1_b": [jnp.full((1,), 0.1, jnp.float32) for _ in range(T)],
            "mlp2_w": [0.01 * jax.random.normal(nxt(), (1, 2 * T - 1),
                                                jnp.float32)
                       for _ in range(T)],
            "mlp2_b": [jnp.full((1,), 0.1, jnp.float32) for _ in range(T)],
        }
        blocks.append(blk)
    params["blocks"] = blocks

    tgt, ptgt = mp["target_item_size"], mp["past_target_size"]
    params["final_w"] = 0.01 * jax.random.normal(nxt(), (C, tgt), jnp.float32)
    params["final_b"] = jnp.full((1, tgt), 0.1, jnp.float32)
    params["past_final_w"] = 0.01 * jax.random.normal(nxt(), (C, ptgt),
                                                      jnp.float32)
    params["past_final_b"] = jnp.full((1, ptgt), 0.1, jnp.float32)
    params["one_layer"] = [
        (0.01 * jax.random.normal(nxt(), (C, ptgt), jnp.float32),
         jnp.full((1, ptgt), 0.1, jnp.float32))
        for _ in range(5)]
    return params


if __name__ == "__main__":
    model_para = dict(
        item_size=50,
        dilated_channels=32,
        dilations=[1, 2],
        kernel_size=3,
        num_task=2,
        task_embs=[0, 2],
        target_item_size=48,
        past_target_size=40,
    )
    B, L = 2, 16

    key = jax.random.PRNGKey(0)
    kp, kx = jax.random.split(key)
    params = init_params(kp, model_para)
    static = prepare_decoder(params, model_para)      # call-invariant prep
    x = jax.random.randint(kx, (B, L), 0, model_para["item_size"],
                           dtype=jnp.int32)
    s = 1.0  # scaling scalar passed to the gates (HAT-style "smax")

    out, out_2, masks = nextitnet_decoder_forward(
        params, static, x, s, task_num=0, model_para=model_para,
        onecall=False, backward=False, current_task=2)
    jax.block_until_ready((out, out_2))

    assert out.shape == (B * L, model_para["target_item_size"])
    assert out_2.shape == (B * L, model_para["past_target_size"])

    # sanity check against a pure-JAX reference (generous tolerance: kernel
    # matmuls and the hidden activations use bf16 with f32 accumulation)
    inputs = params["embedding"][x]
    ref1, ref2 = _reference_forward(params, inputs, s, 0, model_para, 2, False)
    assert jnp.allclose(out, ref1, atol=5e-2, rtol=5e-2)
    assert jnp.allclose(out_2, ref2, atol=5e-2, rtol=5e-2)

    print("KERNEL_OK")
</pallas_src>

<mosaic_0001>
module attributes {stable_mosaic.version = 11 : i64} {
  func.func @_fused_blocks_kernel(%arg0: i32, %arg1: memref<2x16x32xf32, #tpu.memory_space<vmem>>, %arg2: memref<2x3x32x32xbf16, #tpu.memory_space<vmem>>, %arg3: memref<2x3x32x32xbf16, #tpu.memory_space<vmem>>, %arg4: memref<2x8x32xf32, #tpu.memory_space<vmem>>, %arg5: memref<2x16x32xbf16, #tpu.memory_space<vmem>>, %arg6: memref<2x32x32xbf16, #tpu.memory_space<vmem>>) attributes {dimension_semantics = [#tpu.dimension_semantics<parallel>], iteration_bounds = array<i64: 1>, scalar_prefetch = 0 : i64, scratch_operands = 1 : i64, tpu.core_type = #tpu.core_type<tc>, window_params = [{transform_indices = @transform_0, window_bounds = array<i64: 2, 16, 32>}, {pipeline_mode = #tpu.pipeline_mode<synchronous>, transform_indices = @transform_1, window_bounds = array<i64: 2, 3, 32, 32>}, {pipeline_mode = #tpu.pipeline_mode<synchronous>, transform_indices = @transform_2, window_bounds = array<i64: 2, 3, 32, 32>}, {pipeline_mode = #tpu.pipeline_mode<synchronous>, transform_indices = @transform_3, window_bounds = array<i64: 2, 8, 32>}, {transform_indices = @transform_4, window_bounds = array<i64: 2, 16, 32>}]} {
    %cst = arith.constant 0.000000e+00 : bf16
    %0 = vector.broadcast %cst : bf16 to vector<2x16x32xbf16>
    %c0 = arith.constant 0 : index
    %c0_0 = arith.constant 0 : index
    %c0_1 = arith.constant 0 : index
    %1 = vector.load %arg6[%c0, %c0_0, %c0_1] : memref<2x32x32xbf16, #tpu.memory_space<vmem>>, vector<2x16x32xbf16>
    tpu.vector_store %arg6[%c0, %c0_0, %c0_1], %0 {strides = array<i32>} : memref<2x32x32xbf16, #tpu.memory_space<vmem>>, vector<2x16x32xbf16>,
    %c0_2 = arith.constant 0 : index
    %c0_3 = arith.constant 0 : index
    %c0_4 = arith.constant 0 : index
    %2 = vector.load %arg1[%c0_2, %c0_3, %c0_4] : memref<2x16x32xf32, #tpu.memory_space<vmem>>, vector<2x16x32xf32>
    %3 = vector.shape_cast %2 : vector<2x16x32xf32> to vector<32x32xf32>
    %c0_5 = arith.constant 0 : index
    %c0_6 = arith.constant 0 : index
    %c0_7 = arith.constant 0 : index
    %4 = vector.load %arg4[%c0_5, %c0_6, %c0_7] : memref<2x8x32xf32, #tpu.memory_space<vmem>>, vector<1x8x32xf32>
    %5 = vector.shape_cast %4 : vector<1x8x32xf32> to vector<8x32xf32>
    %6 = vector.extract_strided_slice %5 {offsets = [0, 0], sizes = [1, 32], strides = [1, 1]} : vector<8x32xf32> to vector<1x32xf32>
    %7 = vector.extract_strided_slice %5 {offsets = [1, 0], sizes = [1, 32], strides = [1, 1]} : vector<8x32xf32> to vector<1x32xf32>
    %8 = vector.extract_strided_slice %5 {offsets = [2, 0], sizes = [1, 32], strides = [1, 1]} : vector<8x32xf32> to vector<1x32xf32>
    %9 = vector.extract_strided_slice %5 {offsets = [3, 0], sizes = [1, 32], strides = [1, 1]} : vector<8x32xf32> to vector<1x32xf32>
    %10 = vector.extract_strided_slice %5 {offsets = [4, 0], sizes = [1, 32], strides = [1, 1]} : vector<8x32xf32> to vector<1x32xf32>
    %11 = vector.extract_strided_slice %5 {offsets = [5, 0], sizes = [1, 32], strides = [1, 1]} : vector<8x32xf32> to vector<1x32xf32>
    %12 = vector.extract_strided_slice %5 {offsets = [6, 0], sizes = [1, 32], strides = [1, 1]} : vector<8x32xf32> to vector<1x32xf32>
    %13 = vector.extract_strided_slice %5 {offsets = [7, 0], sizes = [1, 32], strides = [1, 1]} : vector<8x32xf32> to vector<1x32xf32>
    %c0_8 = arith.constant 0 : index
    %c0_9 = arith.constant 0 : index
    %c0_10 = arith.constant 0 : index
    %c0_11 = arith.constant 0 : index
    %14 = vector.load %arg2[%c0_8, %c0_9, %c0_10, %c0_11] : memref<2x3x32x32xbf16, #tpu.memory_space<vmem>>, vector<1x3x32x32xbf16>
    %15 = vector.shape_cast %14 : vector<1x3x32x32xbf16> to vector<3x32x32xbf16>
    %16 = arith.truncf %3 : vector<32x32xf32> to vector<32x32xbf16>
    %17 = vector.shape_cast %16 : vector<32x32xbf16> to vector<2x16x32xbf16>
    %c0_12 = arith.constant 0 : index
    %c16 = arith.constant 16 : index
    %c0_13 = arith.constant 0 : index
    %18 = vector.load %arg6[%c0_12, %c16, %c0_13] : memref<2x32x32xbf16, #tpu.memory_space<vmem>>, vector<2x16x32xbf16>
    tpu.vector_store %arg6[%c0_12, %c16, %c0_13], %17 {strides = array<i32>} : memref<2x32x32xbf16, #tpu.memory_space<vmem>>, vector<2x16x32xbf16>,
    %c0_14 = arith.constant 0 : index
    %c14 = arith.constant 14 : index
    %c0_15 = arith.constant 0 : index
    %19 = vector.load %arg6[%c0_14, %c14, %c0_15] : memref<2x32x32xbf16, #tpu.memory_space<vmem>>, vector<2x16x32xbf16>
    %20 = vector.shape_cast %19 : vector<2x16x32xbf16> to vector<32x32xbf16>
    %21 = vector.extract_strided_slice %15 {offsets = [0, 0, 0], sizes = [1, 32, 32], strides = [1, 1, 1]} : vector<3x32x32xbf16> to vector<1x32x32xbf16>
    %22 = vector.shape_cast %21 : vector<1x32x32xbf16> to vector<32x32xbf16>
    %cst_16 = arith.constant dense<0.000000e+00> : vector<32x32xf32>
    %23 = tpu.matmul %20, %22, %cst_16 {dimension_numbers = #tpu.dot_dimension_numbers<[1], [0], [0], [1], [0, 0, 1, 1], [], []>} : vector<32x32xbf16>, vector<32x32xbf16>, vector<32x32xf32> -> vector<32x32xf32>
    %c0_17 = arith.constant 0 : index
    %c15 = arith.constant 15 : index
    %c0_18 = arith.constant 0 : index
    %24 = vector.load %arg6[%c0_17, %c15, %c0_18] : memref<2x32x32xbf16, #tpu.memory_space<vmem>>, vector<2x16x32xbf16>
    %25 = vector.shape_cast %24 : vector<2x16x32xbf16> to vector<32x32xbf16>
    %26 = vector.extract_strided_slice %15 {offsets = [1, 0, 0], sizes = [1, 32, 32], strides = [1, 1, 1]} : vector<3x32x32xbf16> to vector<1x32x32xbf16>
    %27 = vector.shape_cast %26 : vector<1x32x32xbf16> to vector<32x32xbf16>
    %cst_19 = arith.constant dense<0.000000e+00> : vector<32x32xf32>
    %28 = tpu.matmul %25, %27, %cst_19 {dimension_numbers = #tpu.dot_dimension_numbers<[1], [0], [0], [1], [0, 0, 1, 1], [], []>} : vector<32x32xbf16>, vector<32x32xbf16>, vector<32x32xf32> -> vector<32x32xf32>
    %29 = arith.addf %23, %28 : vector<32x32xf32>
    %30 = vector.extract_strided_slice %15 {offsets = [2, 0, 0], sizes = [1, 32, 32], strides = [1, 1, 1]} : vector<3x32x32xbf16> to vector<1x32x32xbf16>
    %31 = vector.shape_cast %30 : vector<1x32x32xbf16> to vector<32x32xbf16>
    %cst_20 = arith.constant dense<0.000000e+00> : vector<32x32xf32>
    %32 = tpu.matmul %16, %31, %cst_20 {dimension_numbers = #tpu.dot_dimension_numbers<[1], [0], [0], [1], [0, 0, 1, 1], [], []>} : vector<32x32xbf16>, vector<32x32xbf16>, vector<32x32xf32> -> vector<32x32xf32>
    %33 = arith.addf %29, %32 : vector<32x32xf32>
    %34 = vector.broadcast %6 : vector<1x32xf32> to vector<32x32xf32>
    %35 = arith.addf %33, %34 : vector<32x32xf32>
    %cst_21 = arith.constant dense<0.000000e+00> : vector<32xf32>
    %36 = vector.multi_reduction <add>, %35, %cst_21 [1] : vector<32x32xf32> to vector<32xf32>
    %37 = vector.shape_cast %36 : vector<32xf32> to vector<32x1xf32>
    %cst_22 = arith.constant 3.200000e+01 : f32
    %38 = vector.broadcast %cst_22 : f32 to vector<32x1xf32>
    %39 = arith.divf %37, %38 : vector<32x1xf32>
    %40 = vector.broadcast %39 : vector<32x1xf32> to vector<32x32xf32>
    %41 = arith.subf %35, %40 : vector<32x32xf32>
    %42 = arith.mulf %41, %41 : vector<32x32xf32>
    %cst_23 = arith.constant dense<0.000000e+00> : vector<32xf32>
    %43 = vector.multi_reduction <add>, %42, %cst_23 [1] : vector<32x32xf32> to vector<32xf32>
    %44 = vector.shape_cast %43 : vector<32xf32> to vector<32x1xf32>
    %cst_24 = arith.constant 3.200000e+01 : f32
    %45 = vector.broadcast %cst_24 : f32 to vector<32x1xf32>
    %46 = arith.divf %44, %45 : vector<32x1xf32>
    %47 = vector.broadcast %39 : vector<32x1xf32> to vector<32x32xf32>
    %48 = arith.subf %35, %47 : vector<32x32xf32>
    %cst_25 = arith.constant 9.99999993E-9 : f32
    %49 = vector.broadcast %cst_25 : f32 to vector<32x1xf32>
    %50 = arith.addf %46, %49 : vector<32x1xf32>
    %51 = math.rsqrt %50 : vector<32x1xf32>
    %52 = vector.broadcast %51 : vector<32x1xf32> to vector<32x32xf32>
    %53 = arith.mulf %48, %52 : vector<32x32xf32>
    %54 = vector.broadcast %7 : vector<1x32xf32> to vector<32x32xf32>
    %55 = arith.mulf %53, %54 : vector<32x32xf32>
    %56 = vector.broadcast %8 : vector<1x32xf32> to vector<32x32xf32>
    %57 = arith.addf %55, %56 : vector<32x32xf32>
    %cst_26 = arith.constant 0.000000e+00 : f32
    %58 = vector.broadcast %cst_26 : f32 to vector<32x32xf32>
    %59 = arith.maximumf %57, %58 : vector<32x32xf32>
    %60 = vector.broadcast %9 : vector<1x32xf32> to vector<32x32xf32>
    %61 = arith.mulf %59, %60 : vector<32x32xf32>
    %c0_27 = arith.constant 0 : index
    %c0_28 = arith.constant 0 : index
    %c0_29 = arith.constant 0 : index
    %c0_30 = arith.constant 0 : index
    %62 = vector.load %arg3[%c0_27, %c0_28, %c0_29, %c0_30] : memref<2x3x32x32xbf16, #tpu.memory_space<vmem>>, vector<1x3x32x32xbf16>
    %63 = vector.shape_cast %62 : vector<1x3x32x32xbf16> to vector<3x32x32xbf16>
    %64 = arith.truncf %61 : vector<32x32xf32> to vector<32x32xbf16>
    %65 = vector.shape_cast %64 : vector<32x32xbf16> to vector<2x16x32xbf16>
    %c0_31 = arith.constant 0 : index
    %c16_32 = arith.constant 16 : index
    %c0_33 = arith.constant 0 : index
    %66 = vector.load %arg6[%c0_31, %c16_32, %c0_33] : memref<2x32x32xbf16, #tpu.memory_space<vmem>>, vector<2x16x32xbf16>
    tpu.vector_store %arg6[%c0_31, %c16_32, %c0_33], %65 {strides = array<i32>} : memref<2x32x32xbf16, #tpu.memory_space<vmem>>, vector<2x16x32xbf16>,
    %c0_34 = arith.constant 0 : index
    %c12 = arith.constant 12 : index
    %c0_35 = arith.constant 0 : index
    %67 = vector.load %arg6[%c0_34, %c12, %c0_35] : memref<2x32x32xbf16, #tpu.memory_space<vmem>>, vector<2x16x32xbf16>
    %68 = vector.shape_cast %67 : vector<2x16x32xbf16> to vector<32x32xbf16>
    %69 = vector.extract_strided_slice %63 {offsets = [0, 0, 0], sizes = [1, 32, 32], strides = [1, 1, 1]} : vector<3x32x32xbf16> to vector<1x32x32xbf16>
    %70 = vector.shape_cast %69 : vector<1x32x32xbf16> to vector<32x32xbf16>
    %cst_36 = arith.constant dense<0.000000e+00> : vector<32x32xf32>
    %71 = tpu.matmul %68, %70, %cst_36 {dimension_numbers = #tpu.dot_dimension_numbers<[1], [0], [0], [1], [0, 0, 1, 1], [], []>} : vector<32x32xbf16>, vector<32x32xbf16>, vector<32x32xf32> -> vector<32x32xf32>
    %c0_37 = arith.constant 0 : index
    %c14_38 = arith.constant 14 : index
    %c0_39 = arith.constant 0 : index
    %72 = vector.load %arg6[%c0_37, %c14_38, %c0_39] : memref<2x32x32xbf16, #tpu.memory_space<vmem>>, vector<2x16x32xbf16>
    %73 = vector.shape_cast %72 : vector<2x16x32xbf16> to vector<32x32xbf16>
    %74 = vector.extract_strided_slice %63 {offsets = [1, 0, 0], sizes = [1, 32, 32], strides = [1, 1, 1]} : vector<3x32x32xbf16> to vector<1x32x32xbf16>
    %75 = vector.shape_cast %74 : vector<1x32x32xbf16> to vector<32x32xbf16>
    %cst_40 = arith.constant dense<0.000000e+00> : vector<32x32xf32>
    %76 = tpu.matmul %73, %75, %cst_40 {dimension_numbers = #tpu.dot_dimension_numbers<[1], [0], [0], [1], [0, 0, 1, 1], [], []>} : vector<32x32xbf16>, vector<32x32xbf16>, vector<32x32xf32> -> vector<32x32xf32>
    %77 = arith.addf %71, %76 : vector<32x32xf32>
    %78 = vector.extract_strided_slice %63 {offsets = [2, 0, 0], sizes = [1, 32, 32], strides = [1, 1, 1]} : vector<3x32x32xbf16> to vector<1x32x32xbf16>
    %79 = vector.shape_cast %78 : vector<1x32x32xbf16> to vector<32x32xbf16>
    %cst_41 = arith.constant dense<0.000000e+00> : vector<32x32xf32>
    %80 = tpu.matmul %64, %79, %cst_41 {dimension_numbers = #tpu.dot_dimension_numbers<[1], [0], [0], [1], [0, 0, 1, 1], [], []>} : vector<32x32xbf16>, vector<32x32xbf16>, vector<32x32xf32> -> vector<32x32xf32>
    %81 = arith.addf %77, %80 : vector<32x32xf32>
    %82 = vector.broadcast %10 : vector<1x32xf32> to vector<32x32xf32>
    %83 = arith.addf %81, %82 : vector<32x32xf32>
    %cst_42 = arith.constant dense<0.000000e+00> : vector<32xf32>
    %84 = vector.multi_reduction <add>, %83, %cst_42 [1] : vector<32x32xf32> to vector<32xf32>
    %85 = vector.shape_cast %84 : vector<32xf32> to vector<32x1xf32>
    %cst_43 = arith.constant 3.200000e+01 : f32
    %86 = vector.broadcast %cst_43 : f32 to vector<32x1xf32>
    %87 = arith.divf %85, %86 : vector<32x1xf32>
    %88 = vector.broadcast %87 : vector<32x1xf32> to vector<32x32xf32>
    %89 = arith.subf %83, %88 : vector<32x32xf32>
    %90 = arith.mulf %89, %89 : vector<32x32xf32>
    %cst_44 = arith.constant dense<0.000000e+00> : vector<32xf32>
    %91 = vector.multi_reduction <add>, %90, %cst_44 [1] : vector<32x32xf32> to vector<32xf32>
    %92 = vector.shape_cast %91 : vector<32xf32> to vector<32x1xf32>
    %cst_45 = arith.constant 3.200000e+01 : f32
    %93 = vector.broadcast %cst_45 : f32 to vector<32x1xf32>
    %94 = arith.divf %92, %93 : vector<32x1xf32>
    %95 = vector.broadcast %87 : vector<32x1xf32> to vector<32x32xf32>
    %96 = arith.subf %83, %95 : vector<32x32xf32>
    %cst_46 = arith.constant 9.99999993E-9 : f32
    %97 = vector.broadcast %cst_46 : f32 to vector<32x1xf32>
    %98 = arith.addf %94, %97 : vector<32x1xf32>
    %99 = math.rsqrt %98 : vector<32x1xf32>
    %100 = vector.broadcast %99 : vector<32x1xf32> to vector<32x32xf32>
    %101 = arith.mulf %96, %100 : vector<32x32xf32>
    %102 = vector.broadcast %11 : vector<1x32xf32> to vector<32x32xf32>
    %103 = arith.mulf %101, %102 : vector<32x32xf32>
    %104 = vector.broadcast %12 : vector<1x32xf32> to vector<32x32xf32>
    %105 = arith.addf %103, %104 : vector<32x32xf32>
    %cst_47 = arith.constant 0.000000e+00 : f32
    %106 = vector.broadcast %cst_47 : f32 to vector<32x32xf32>
    %107 = arith.maximumf %105, %106 : vector<32x32xf32>
    %108 = vector.broadcast %13 : vector<1x32xf32> to vector<32x32xf32>
    %109 = arith.mulf %107, %108 : vector<32x32xf32>
    %110 = arith.addf %109, %3 : vector<32x32xf32>
    %c1 = arith.constant 1 : index
    %c0_48 = arith.constant 0 : index
    %c0_49 = arith.constant 0 : index
    %111 = vector.load %arg4[%c1, %c0_48, %c0_49] : memref<2x8x32xf32, #tpu.memory_space<vmem>>, vector<1x8x32xf32>
    %112 = vector.shape_cast %111 : vector<1x8x32xf32> to vector<8x32xf32>
    %113 = vector.extract_strided_slice %112 {offsets = [0, 0], sizes = [1, 32], strides = [1, 1]} : vector<8x32xf32> to vector<1x32xf32>
    %114 = vector.extract_strided_slice %112 {offsets = [1, 0], sizes = [1, 32], strides = [1, 1]} : vector<8x32xf32> to vector<1x32xf32>
    %115 = vector.extract_strided_slice %112 {offsets = [2, 0], sizes = [1, 32], strides = [1, 1]} : vector<8x32xf32> to vector<1x32xf32>
    %116 = vector.extract_strided_slice %112 {offsets = [3, 0], sizes = [1, 32], strides = [1, 1]} : vector<8x32xf32> to vector<1x32xf32>
    %117 = vector.extract_strided_slice %112 {offsets = [4, 0], sizes = [1, 32], strides = [1, 1]} : vector<8x32xf32> to vector<1x32xf32>
    %118 = vector.extract_strided_slice %112 {offsets = [5, 0], sizes = [1, 32], strides = [1, 1]} : vector<8x32xf32> to vector<1x32xf32>
    %119 = vector.extract_strided_slice %112 {offsets = [6, 0], sizes = [1, 32], strides = [1, 1]} : vector<8x32xf32> to vector<1x32xf32>
    %120 = vector.extract_strided_slice %112 {offsets = [7, 0], sizes = [1, 32], strides = [1, 1]} : vector<8x32xf32> to vector<1x32xf32>
    %c1_50 = arith.constant 1 : index
    %c0_51 = arith.constant 0 : index
    %c0_52 = arith.constant 0 : index
    %c0_53 = arith.constant 0 : index
    %121 = vector.load %arg2[%c1_50, %c0_51, %c0_52, %c0_53] : memref<2x3x32x32xbf16, #tpu.memory_space<vmem>>, vector<1x3x32x32xbf16>
    %122 = vector.shape_cast %121 : vector<1x3x32x32xbf16> to vector<3x32x32xbf16>
    %123 = arith.truncf %110 : vector<32x32xf32> to vector<32x32xbf16>
    %124 = vector.shape_cast %123 : vector<32x32xbf16> to vector<2x16x32xbf16>
    %c0_54 = arith.constant 0 : index
    %c16_55 = arith.constant 16 : index
    %c0_56 = arith.constant 0 : index
    %125 = vector.load %arg6[%c0_54, %c16_55, %c0_56] : memref<2x32x32xbf16, #tpu.memory_space<vmem>>, vector<2x16x32xbf16>
    tpu.vector_store %arg6[%c0_54, %c16_55, %c0_56], %124 {strides = array<i32>} : memref<2x32x32xbf16, #tpu.memory_space<vmem>>, vector<2x16x32xbf16>,
    %c0_57 = arith.constant 0 : index
    %c12_58 = arith.constant 12 : index
    %c0_59 = arith.constant 0 : index
    %126 = vector.load %arg6[%c0_57, %c12_58, %c0_59] : memref<2x32x32xbf16, #tpu.memory_space<vmem>>, vector<2x16x32xbf16>
    %127 = vector.shape_cast %126 : vector<2x16x32xbf16> to vector<32x32xbf16>
    %128 = vector.extract_strided_slice %122 {offsets = [0, 0, 0], sizes = [1, 32, 32], strides = [1, 1, 1]} : vector<3x32x32xbf16> to vector<1x32x32xbf16>
    %129 = vector.shape_cast %128 : vector<1x32x32xbf16> to vector<32x32xbf16>
    %cst_60 = arith.constant dense<0.000000e+00> : vector<32x32xf32>
    %130 = tpu.matmul %127, %129, %cst_60 {dimension_numbers = #tpu.dot_dimension_numbers<[1], [0], [0], [1], [0, 0, 1, 1], [], []>} : vector<32x32xbf16>, vector<32x32xbf16>, vector<32x32xf32> -> vector<32x32xf32>
    %c0_61 = arith.constant 0 : index
    %c14_62 = arith.constant 14 : index
    %c0_63 = arith.constant 0 : index
    %131 = vector.load %arg6[%c0_61, %c14_62, %c0_63] : memref<2x32x32xbf16, #tpu.memory_space<vmem>>, vector<2x16x32xbf16>
    %132 = vector.shape_cast %131 : vector<2x16x32xbf16> to vector<32x32xbf16>
    %133 = vector.extract_strided_slice %122 {offsets = [1, 0, 0], sizes = [1, 32, 32], strides = [1, 1, 1]} : vector<3x32x32xbf16> to vector<1x32x32xbf16>
    %134 = vector.shape_cast %133 : vector<1x32x32xbf16> to vector<32x32xbf16>
    %cst_64 = arith.constant dense<0.000000e+00> : vector<32x32xf32>
    %135 = tpu.matmul %132, %134, %cst_64 {dimension_numbers = #tpu.dot_dimension_numbers<[1], [0], [0], [1], [0, 0, 1, 1], [], []>} : vector<32x32xbf16>, vector<32x32xbf16>, vector<32x32xf32> -> vector<32x32xf32>
    %136 = arith.addf %130, %135 : vector<32x32xf32>
    %137 = vector.extract_strided_slice %122 {offsets = [2, 0, 0], sizes = [1, 32, 32], strides = [1, 1, 1]} : vector<3x32x32xbf16> to vector<1x32x32xbf16>
    %138 = vector.shape_cast %137 : vector<1x32x32xbf16> to vector<32x32xbf16>
    %cst_65 = arith.constant dense<0.000000e+00> : vector<32x32xf32>
    %139 = tpu.matmul %123, %138, %cst_65 {dimension_numbers = #tpu.dot_dimension_numbers<[1], [0], [0], [1], [0, 0, 1, 1], [], []>} : vector<32x32xbf16>, vector<32x32xbf16>, vector<32x32xf32> -> vector<32x32xf32>
    %140 = arith.addf %136, %139 : vector<32x32xf32>
    %141 = vector.broadcast %113 : vector<1x32xf32> to vector<32x32xf32>
    %142 = arith.addf %140, %141 : vector<32x32xf32>
    %cst_66 = arith.constant dense<0.000000e+00> : vector<32xf32>
    %143 = vector.multi_reduction <add>, %142, %cst_66 [1] : vector<32x32xf32> to vector<32xf32>
    %144 = vector.shape_cast %143 : vector<32xf32> to vector<32x1xf32>
    %cst_67 = arith.constant 3.200000e+01 : f32
    %145 = vector.broadcast %cst_67 : f32 to vector<32x1xf32>
    %146 = arith.divf %144, %145 : vector<32x1xf32>
    %147 = vector.broadcast %146 : vector<32x1xf32> to vector<32x32xf32>
    %148 = arith.subf %142, %147 : vector<32x32xf32>
    %149 = arith.mulf %148, %148 : vector<32x32xf32>
    %cst_68 = arith.constant dense<0.000000e+00> : vector<32xf32>
    %150 = vector.multi_reduction <add>, %149, %cst_68 [1] : vector<32x32xf32> to vector<32xf32>
    %151 = vector.shape_cast %150 : vector<32xf32> to vector<32x1xf32>
    %cst_69 = arith.constant 3.200000e+01 : f32
    %152 = vector.broadcast %cst_69 : f32 to vector<32x1xf32>
    %153 = arith.divf %151, %152 : vector<32x1xf32>
    %154 = vector.broadcast %146 : vector<32x1xf32> to vector<32x32xf32>
    %155 = arith.subf %142, %154 : vector<32x32xf32>
    %cst_70 = arith.constant 9.99999993E-9 : f32
    %156 = vector.broadcast %cst_70 : f32 to vector<32x1xf32>
    %157 = arith.addf %153, %156 : vector<32x1xf32>
    %158 = math.rsqrt %157 : vector<32x1xf32>
    %159 = vector.broadcast %158 : vector<32x1xf32> to vector<32x32xf32>
    %160 = arith.mulf %155, %159 : vector<32x32xf32>
    %161 = vector.broadcast %114 : vector<1x32xf32> to vector<32x32xf32>
    %162 = arith.mulf %160, %161 : vector<32x32xf32>
    %163 = vector.broadcast %115 : vector<1x32xf32> to vector<32x32xf32>
    %164 = arith.addf %162, %163 : vector<32x32xf32>
    %cst_71 = arith.constant 0.000000e+00 : f32
    %165 = vector.broadcast %cst_71 : f32 to vector<32x32xf32>
    %166 = arith.maximumf %164, %165 : vector<32x32xf32>
    %167 = vector.broadcast %116 : vector<1x32xf32> to vector<32x32xf32>
    %168 = arith.mulf %166, %167 : vector<32x32xf32>
    %c1_72 = arith.constant 1 : index
    %c0_73 = arith.constant 0 : index
    %c0_74 = arith.constant 0 : index
    %c0_75 = arith.constant 0 : index
    %169 = vector.load %arg3[%c1_72, %c0_73, %c0_74, %c0_75] : memref<2x3x32x32xbf16, #tpu.memory_space<vmem>>, vector<1x3x32x32xbf16>
    %170 = vector.shape_cast %169 : vector<1x3x32x32xbf16> to vector<3x32x32xbf16>
    %171 = arith.truncf %168 : vector<32x32xf32> to vector<32x32xbf16>
    %172 = vector.shape_cast %171 : vector<32x32xbf16> to vector<2x16x32xbf16>
    %c0_76 = arith.constant 0 : index
    %c16_77 = arith.constant 16 : index
    %c0_78 = arith.constant 0 : index
    %173 = vector.load %arg6[%c0_76, %c16_77, %c0_78] : memref<2x32x32xbf16, #tpu.memory_space<vmem>>, vector<2x16x32xbf16>
    tpu.vector_store %arg6[%c0_76, %c16_77, %c0_78], %172 {strides = array<i32>} : memref<2x32x32xbf16, #tpu.memory_space<vmem>>, vector<2x16x32xbf16>,
    %c0_79 = arith.constant 0 : index
    %c8 = arith.constant 8 : index
    %c0_80 = arith.constant 0 : index
    %174 = vector.load %arg6[%c0_79, %c8, %c0_80] : memref<2x32x32xbf16, #tpu.memory_space<vmem>>, vector<2x16x32xbf16>
    %175 = vector.shape_cast %174 : vector<2x16x32xbf16> to vector<32x32xbf16>
    %176 = vector.extract_strided_slice %170 {offsets = [0, 0, 0], sizes = [1, 32, 32], strides = [1, 1, 1]} : vector<3x32x32xbf16> to vector<1x32x32xbf16>
    %177 = vector.shape_cast %176 : vector<1x32x32xbf16> to vector<32x32xbf16>
    %cst_81 = arith.constant dense<0.000000e+00> : vector<32x32xf32>
    %178 = tpu.matmul %175, %177, %cst_81 {dimension_numbers = #tpu.dot_dimension_numbers<[1], [0], [0], [1], [0, 0, 1, 1], [], []>} : vector<32x32xbf16>, vector<32x32xbf16>, vector<32x32xf32> -> vector<32x32xf32>
    %c0_82 = arith.constant 0 : index
    %c12_83 = arith.constant 12 : index
    %c0_84 = arith.constant 0 : index
    %179 = vector.load %arg6[%c0_82, %c12_83, %c0_84] : memref<2x32x32xbf16, #tpu.memory_space<vmem>>, vector<2x16x32xbf16>
    %180 = vector.shape_cast %179 : vector<2x16x32xbf16> to vector<32x32xbf16>
    %181 = vector.extract_strided_slice %170 {offsets = [1, 0, 0], sizes = [1, 32, 32], strides = [1, 1, 1]} : vector<3x32x32xbf16> to vector<1x32x32xbf16>
    %182 = vector.shape_cast %181 : vector<1x32x32xbf16> to vector<32x32xbf16>
    %cst_85 = arith.constant dense<0.000000e+00> : vector<32x32xf32>
    %183 = tpu.matmul %180, %182, %cst_85 {dimension_numbers = #tpu.dot_dimension_numbers<[1], [0], [0], [1], [0, 0, 1, 1], [], []>} : vector<32x32xbf16>, vector<32x32xbf16>, vector<32x32xf32> -> vector<32x32xf32>
    %184 = arith.addf %178, %183 : vector<32x32xf32>
    %185 = vector.extract_strided_slice %170 {offsets = [2, 0, 0], sizes = [1, 32, 32], strides = [1, 1, 1]} : vector<3x32x32xbf16> to vector<1x32x32xbf16>
    %186 = vector.shape_cast %185 : vector<1x32x32xbf16> to vector<32x32xbf16>
    %cst_86 = arith.constant dense<0.000000e+00> : vector<32x32xf32>
    %187 = tpu.matmul %171, %186, %cst_86 {dimension_numbers = #tpu.dot_dimension_numbers<[1], [0], [0], [1], [0, 0, 1, 1], [], []>} : vector<32x32xbf16>, vector<32x32xbf16>, vector<32x32xf32> -> vector<32x32xf32>
    %188 = arith.addf %184, %187 : vector<32x32xf32>
    %189 = vector.broadcast %117 : vector<1x32xf32> to vector<32x32xf32>
    %190 = arith.addf %188, %189 : vector<32x32xf32>
    %cst_87 = arith.constant dense<0.000000e+00> : vector<32xf32>
    %191 = vector.multi_reduction <add>, %190, %cst_87 [1] : vector<32x32xf32> to vector<32xf32>
    %192 = vector.shape_cast %191 : vector<32xf32> to vector<32x1xf32>
    %cst_88 = arith.constant 3.200000e+01 : f32
    %193 = vector.broadcast %cst_88 : f32 to vector<32x1xf32>
    %194 = arith.divf %192, %193 : vector<32x1xf32>
    %195 = vector.broadcast %194 : vector<32x1xf32> to vector<32x32xf32>
    %196 = arith.subf %190, %195 : vector<32x32xf32>
    %197 = arith.mulf %196, %196 : vector<32x32xf32>
    %cst_89 = arith.constant dense<0.000000e+00> : vector<32xf32>
    %198 = vector.multi_reduction <add>, %197, %cst_89 [1] : vector<32x32xf32> to vector<32xf32>
    %199 = vector.shape_cast %198 : vector<32xf32> to vector<32x1xf32>
    %cst_90 = arith.constant 3.200000e+01 : f32
    %200 = vector.broadcast %cst_90 : f32 to vector<32x1xf32>
    %201 = arith.divf %199, %200 : vector<32x1xf32>
    %202 = vector.broadcast %194 : vector<32x1xf32> to vector<32x32xf32>
    %203 = arith.subf %190, %202 : vector<32x32xf32>
    %cst_91 = arith.constant 9.99999993E-9 : f32
    %204 = vector.broadcast %cst_91 : f32 to vector<32x1xf32>
    %205 = arith.addf %201, %204 : vector<32x1xf32>
    %206 = math.rsqrt %205 : vector<32x1xf32>
    %207 = vector.broadcast %206 : vector<32x1xf32> to vector<32x32xf32>
    %208 = arith.mulf %203, %207 : vector<32x32xf32>
    %209 = vector.broadcast %118 : vector<1x32xf32> to vector<32x32xf32>
    %210 = arith.mulf %208, %209 : vector<32x32xf32>
    %211 = vector.broadcast %119 : vector<1x32xf32> to vector<32x32xf32>
    %212 = arith.addf %210, %211 : vector<32x32xf32>
    %cst_92 = arith.constant 0.000000e+00 : f32
    %213 = vector.broadcast %cst_92 : f32 to vector<32x32xf32>
    %214 = arith.maximumf %212, %213 : vector<32x32xf32>
    %215 = vector.broadcast %120 : vector<1x32xf32> to vector<32x32xf32>
    %216 = arith.mulf %214, %215 : vector<32x32xf32>
    %217 = arith.addf %216, %110 : vector<32x32xf32>
    %218 = vector.shape_cast %217 : vector<32x32xf32> to vector<2x16x32xf32>
    %219 = arith.truncf %218 : vector<2x16x32xf32> to vector<2x16x32xbf16>
    %c0_93 = arith.constant 0 : index
    %c0_94 = arith.constant 0 : index
    %c0_95 = arith.constant 0 : index
    %220 = vector.load %arg5[%c0_93, %c0_94, %c0_95] : memref<2x16x32xbf16, #tpu.memory_space<vmem>>, vector<2x16x32xbf16>
    tpu.vector_store %arg5[%c0_93, %c0_94, %c0_95], %219 {strides = array<i32>} : memref<2x16x32xbf16, #tpu.memory_space<vmem>>, vector<2x16x32xbf16>,
    return
  }
  func.func @transform_0(%arg0: i32) -> (i32, i32, i32) {
    %c0_i32 = arith.constant 0 : i32
    %c0_i32_0 = arith.constant 0 : i32
    %c0_i32_1 = arith.constant 0 : i32
    return %arg0, %c0_i32, %c0_i32_0 : i32, i32, i32
  }
  func.func @transform_1(%arg0: i32) -> (i32, i32, i32, i32) {
    %c0_i32 = arith.constant 0 : i32
    %c0_i32_0 = arith.constant 0 : i32
    %c0_i32_1 = arith.constant 0 : i32
    %c0_i32_2 = arith.constant 0 : i32
    %c0_i32_3 = arith.constant 0 : i32
    return %c0_i32, %c0_i32_0, %c0_i32_1, %c0_i32_2 : i32, i32, i32, i32
  }
  func.func @transform_2(%arg0: i32) -> (i32, i32, i32, i32) {
    %c0_i32 = arith.constant 0 : i32
    %c0_i32_0 = arith.constant 0 : i32
    %c0_i32_1 = arith.constant 0 : i32
    %c0_i32_2 = arith.constant 0 : i32
    %c0_i32_3 = arith.constant 0 : i32
    return %c0_i32, %c0_i32_0, %c0_i32_1, %c0_i32_2 : i32, i32, i32, i32
  }
  func.func @transform_3(%arg0: i32) -> (i32, i32, i32) {
    %c0_i32 = arith.constant 0 : i32
    %c0_i32_0 = arith.constant 0 : i32
    %c0_i32_1 = arith.constant 0 : i32
    %c0_i32_2 = arith.constant 0 : i32
    return %c0_i32, %c0_i32_0, %c0_i32_1 : i32, i32, i32
  }
  func.func @transform_4(%arg0: i32) -> (i32, i32, i32) {
    %c0_i32 = arith.constant 0 : i32
    %c0_i32_0 = arith.constant 0 : i32
    %c0_i32_1 = arith.constant 0 : i32
    return %arg0, %c0_i32, %c0_i32_0 : i32, i32, i32
  }
}

</mosaic_0001>

<llo_original>
// kernel: tpu_custom_call.1
$region0: #{tpu_custom_call.1}
  #allocation0 [shape = 'u32[]', space=smem, size = 0x4, offset = 0x4, fixed_abs, tag = 'smem constant byte address 0x4 - core index']
  #allocation1 [shape = 'u32[144,128]{1,0:T(1,128)}', space=vmem, size = 0x12000, scoped, tag = 'internal scratch']
  #allocation2 [shape = 'bf16[2,32,32]{2,1,0:T(16,128)(2,1)}', space=vmem, size = 0x4000, scoped, tag = 'scratch operand']
  %s0 = inlined_call_operand.hbm [shape: f32[2,16,32], index: 0, kind: input, shape index: {}]
  %s1 = inlined_call_operand.hbm [shape: bf16[2,3,32,32], index: 1, kind: input, shape index: {}]
  %s2 = inlined_call_operand.hbm [shape: bf16[2,3,32,32], index: 2, kind: input, shape index: {}]
  %s3 = inlined_call_operand.hbm [shape: f32[2,8,32], index: 3, kind: input, shape index: {}]
  %s4 = inlined_call_operand.hbm [shape: bf16[2,16,32], index: 4, kind: output, shape index: {}]
  %s5 = sld [smem:[#allocation0]]
  $region42: #{tpu_custom_call.1} parent=0
    _
  %s7 = ssub.s32 1, %s5
  %s8 = scalar_select 0, %s7, %s5
  $region1: #{tpu_custom_call.1} parent=0
    #allocation3 [shape = 'u8[16384]{0}', space=vmem, size = 0x4000, scoped, tag = 'input window, operand 0, single buffered']
    #allocation4 [shape = 's32[1]{0}', space=sflag, size = 0x4, scoped, tag = 'scoped memory for tpu_custom_call.1']
    #allocation5 [shape = 's32[1]{0}', space=sflag, size = 0x4, scoped, tag = 'scoped memory for tpu_custom_call.1']
    #allocation6 [shape = 'u8[49152]{0}', space=vmem, size = 0xc000, scoped, tag = 'input window, operand 1, single buffered']
    #allocation7 [shape = 's32[1]{0}', space=sflag, size = 0x4, scoped, tag = 'scoped memory for tpu_custom_call.1']
    #allocation8 [shape = 'u8[49152]{0}', space=vmem, size = 0xc000, scoped, tag = 'input window, operand 2, single buffered']
    #allocation9 [shape = 'u8[8192]{0}', space=vmem, size = 0x2000, scoped, tag = 'input window, operand 3, single buffered']
    #allocation10 [shape = 's32[1]{0}', space=sflag, size = 0x4, scoped, tag = 'scoped memory for tpu_custom_call.1']
    #allocation11 [shape = 'u8[8192]{0}', space=vmem, size = 0x2000, scoped, tag = 'output window, operand 0, single buffered']
    %9 = vsyncpa [#allocation4], 0
    %10 = vsyncpa [#allocation7], 0
    %11 = vsyncpa [#allocation10], 0
    %12 = vsyncpa [#allocation5], 0
    // Predicated region
    $region2: #{tpu_custom_call.1} parent=1 // pred_check
      _
    $region3: #{tpu_custom_call.1} parent=1 // pred_check_branch
      %14 = sbr.rel (0) target = $region5
    $region4: #{tpu_custom_call.1} parent=1 // pred_region
      %s16 = ssub.s32 512, 512
      %17 = vsyncadd [#allocation4], %s16
      %s18 = sshll.u32 [#allocation3], 4
      %s19 = int_to_ptr.vmem [resolvable:$true] %s18
      %24 = dma.hbm_to_vmem [thread:$0]  %s0, 512, %s19, [#allocation4], 128, 128, 8
    $region5: #{tpu_custom_call.1} parent=1 // pred_fallthru
      _
    // Predicated region
    $region6: #{tpu_custom_call.1} parent=1 // pred_check
      _
    $region7: #{tpu_custom_call.1} parent=1 // pred_check_branch
      %26 = sbr.rel (0) target = $region9
    $region8: #{tpu_custom_call.1} parent=1 // pred_region
      %s28 = ssub.s32 1536, 1536
      %29 = vsyncadd [#allocation7], %s28
      %s30 = sshll.u32 [#allocation6], 4
      %s31 = int_to_ptr.vmem [resolvable:$true] %s30
      %36 = dma.hbm_to_vmem [thread:$0]  %s1, 1536, %s31, [#allocation7], 64, 64, 4
    $region9: #{tpu_custom_call.1} parent=1 // pred_fallthru
      _
    // Predicated region
    $region10: #{tpu_custom_call.1} parent=1 // pred_check
      _
    $region11: #{tpu_custom_call.1} parent=1 // pred_check_branch
      %38 = sbr.rel (0) target = $region13
    $region12: #{tpu_custom_call.1} parent=1 // pred_region
      %s40 = ssub.s32 1536, 1536
      %41 = vsyncadd [#allocation7], %s40
      %s42 = sshll.u32 [#allocation8], 4
      %s43 = int_to_ptr.vmem [resolvable:$true] %s42
      %48 = dma.hbm_to_vmem [thread:$0]  %s2, 1536, %s43, [#allocation7], 64, 64, 4
    $region13: #{tpu_custom_call.1} parent=1 // pred_fallthru
      _
    // Predicated region
    $region14: #{tpu_custom_call.1} parent=1 // pred_check
      _
    $region15: #{tpu_custom_call.1} parent=1 // pred_check_branch
      %50 = sbr.rel (0) target = $region17
    $region16: #{tpu_custom_call.1} parent=1 // pred_region
      %s52 = ssub.s32 256, 256
      %53 = vsyncadd [#allocation10], %s52
      %s54 = sshll.u32 [#allocation9], 4
      %s55 = int_to_ptr.vmem [resolvable:$true] %s54
      %60 = dma.hbm_to_vmem [thread:$0]  %s3, 256, %s55, [#allocation10], 128, 128, 8
    $region17: #{tpu_custom_call.1} parent=1 // pred_fallthru
      _
    // Predicated region
    $region18: #{tpu_custom_call.1} parent=1 // pred_check
      _
    $region19: #{tpu_custom_call.1} parent=1 // pred_check_branch
      %62 = sbr.rel (0) target = $region21
    $region20: #{tpu_custom_call.1} parent=1 // pred_region
      %63 = dma.done [#allocation4], 512
    $region21: #{tpu_custom_call.1} parent=1 // pred_fallthru
      _
    // Predicated region
    $region22: #{tpu_custom_call.1} parent=1 // pred_check
      _
    $region23: #{tpu_custom_call.1} parent=1 // pred_check_branch
      %65 = sbr.rel (0) target = $region25
    $region24: #{tpu_custom_call.1} parent=1 // pred_region
      %66 = dma.done [#allocation7], 1536
    $region25: #{tpu_custom_call.1} parent=1 // pred_fallthru
      _
    // Predicated region
    $region26: #{tpu_custom_call.1} parent=1 // pred_check
      _
    $region27: #{tpu_custom_call.1} parent=1 // pred_check_branch
      %68 = sbr.rel (0) target = $region29
    $region28: #{tpu_custom_call.1} parent=1 // pred_region
      %69 = dma.done [#allocation7], 1536
    $region29: #{tpu_custom_call.1} parent=1 // pred_fallthru
      _
    // Predicated region
    $region30: #{tpu_custom_call.1} parent=1 // pred_check
      _
    $region31: #{tpu_custom_call.1} parent=1 // pred_check_branch
      %71 = sbr.rel (0) target = $region33
    $region32: #{tpu_custom_call.1} parent=1 // pred_region
      %72 = dma.done [#allocation10], 256
    $region33: #{tpu_custom_call.1} parent=1 // pred_fallthru
      _
    %vm74 = vcmask 261120
    %75 = vst.msk [vmem:[#allocation2] sm:$0xff] %vm74, 0
    %76 = vst.msk [vmem:[#allocation2 + $0x10] sm:$0xff] %vm74, 0
    %v77 = vld [vmem:[#allocation3] sm:$0xff]
    %v78 = vld [vmem:[#allocation3 + $0x8] sm:$0xff]
    %v79 = vld [vmem:[#allocation3 + $0x10] sm:$0xff]
    %v80 = vld [vmem:[#allocation3 + $0x18] sm:$0xff]
    %v81 = vld [vmem:[#allocation9] sm:$0xff]
    %v82 = vld [vmem:[#allocation6] sm:$0xf]
    %v83 = vld [vmem:[#allocation6 + $0x4] sm:$0xf]
    %v84 = vld [vmem:[#allocation6 + $0x8] sm:$0xf]
    %v85 = vld [vmem:[#allocation6 + $0xc] sm:$0xf]
    %v86 = vld [vmem:[#allocation6 + $0x10] sm:$0xf]
    %v87 = vld [vmem:[#allocation6 + $0x14] sm:$0xf]
    %v88 = vld [vmem:[#allocation6 + $0x18] sm:$0xf]
    %v89 = vld [vmem:[#allocation6 + $0x1c] sm:$0xf]
    %v90 = vld [vmem:[#allocation6 + $0x20] sm:$0xf]
    %v91 = vld [vmem:[#allocation6 + $0x24] sm:$0xf]
    %v92 = vld [vmem:[#allocation6 + $0x28] sm:$0xf]
    %v93 = vld [vmem:[#allocation6 + $0x2c] sm:$0xf]
    %v94 = vpack.c.bf16 %v78, %v77
    %v95 = vpack.c.bf16 %v80, %v79
    %96 = vst.msk [vmem:[#allocation2 + $0x8] sm:$0xff] %vm74, %v94
    %97 = vst.msk [vmem:[#allocation2 + $0x18] sm:$0xff] %vm74, %v95
    %v98 = vld [vmem:[#allocation2] sm:$0x80]
    %v99 = vld [vmem:[#allocation2 + $0x8] sm:$0x7f]
    %v100 = vld [vmem:[#allocation2 + $0x10] sm:$0x80]
    %v101 = vld [vmem:[#allocation2 + $0x18] sm:$0x7f]
    %vm106 = vcmask 1040384
    %v107 = vrot.slane %v98, 7
    %v108 = vrot.slane %v99, 7
    %v109 = vsel %vm106, %v107, %v108
    %v110 = vrot.slane %v100, 7
    %v111 = vrot.slane %v101, 7
    %v112 = vsel %vm106, %v110, %v111
    %v113 = vld [vmem:[#allocation2 + $0x8] sm:$0xff]
    %v114 = vld [vmem:[#allocation2 + $0x18] sm:$0xff]
    %vm115 = vsmask.f32 256
    %v117 = vshrl.u32 %v98, 16
    %v119 = vrot.slane %v117, 7
    %v121 = vshrl.u32 %v113, 16
    %v123 = vrot.slane %v121, 7
    %v124 = vshll.u32 %v113, 16
    %v126 = vor.u32 %v123, %v124
    %v127 = vsel %vm115, %v119, %v126
    %v129 = vshrl.u32 %v100, 16
    %v131 = vrot.slane %v129, 7
    %v133 = vshrl.u32 %v114, 16
    %v135 = vrot.slane %v133, 7
    %v136 = vshll.u32 %v114, 16
    %v138 = vor.u32 %v135, %v136
    %v139 = vsel %vm115, %v131, %v138
    %v144 = vunpack.c.l.b16 %v86
    %v145 = vunpack.c.l.b16 %v87
    %v146 = vunpack.c.l.b16 %v88
    %v147 = vunpack.c.l.b16 %v89
    %v148 = vpack.c.b16 %v145, %v144
    %v149 = vpack.c.b16 %v147, %v146
    %v153 = vsel %vm74, %v127, 0
    %v156 = vsel %vm74, %v139, 0
    %158 = vmatprep.subr.bf16.mxu0 0
    %159 = vmatpush1.bf16.msra.mxu0 %v148
    %160 = vmatprep.subr.bf16.mxu0 0
    %161 = vmatpush1.bf16.msra.mxu0 %v149
    %162 = vmatprep.subr.bf16.mxu0 0
    %163 = vmatpush1.bf16.msra.mxu0 0
    %164 = vmatprep.subr.bf16.mxu0 0
    %165 = vmatpush1.bf16.msra.mxu0 0
    %166 = vmatprep.subr.bf16.mxu0 0
    %167 = vmatpush1.bf16.msra.mxu0 0
    %168 = vmatprep.subr.bf16.mxu0 0
    %169 = vmatpush1.bf16.msra.mxu0 0
    %170 = vmatprep.subr.bf16.mxu0 0
    %171 = vmatpush1.bf16.msra.mxu0 0
    %172 = vmatprep.subr.bf16.mxu0 0
    %173 = vmatpush1.bf16.msra.mxu0 0
    %174 = vmatprep.subr.bf16.mxu0 0
    %175 = vmatpush1.bf16.msra.mxu0 0
    %176 = vmatprep.subr.bf16.mxu0 0
    %177 = vmatpush1.bf16.msra.mxu0 0
    %178 = vmatprep.subr.bf16.mxu0 0
    %179 = vmatpush1.bf16.msra.mxu0 0
    %180 = vmatprep.subr.bf16.mxu0 0
    %181 = vmatpush1.bf16.msra.mxu0 0
    %182 = vmatprep.subr.bf16.mxu0 0
    %183 = vmatpush1.bf16.msra.mxu0 0
    %184 = vmatprep.subr.bf16.mxu0 0
    %185 = vmatpush1.bf16.msra.mxu0 0
    %186 = vmatprep.subr.bf16.mxu0 0
    %187 = vmatpush1.bf16.msra.mxu0 0
    %188 = vmatprep.subr.bf16.mxu0 0
    %189 = vmatpush1.bf16.msra.mxu0 0
    %190 = vmatprep.mubr.bf16.mxu0 0
    %191 = vmatmul.mubr.bf16.gmra.mrb[0].mxu0 %v153
    %v192 = vpop.f32.mrb[0].mxu0
    %v193 = vadd.f32 0.0, %v192
    %v194 = vpop.f32.mrb[0].mxu0
    %v195 = vpop.f32.mrb[0].mxu0
    %v196 = vadd.f32 0.0, %v195
    %v197 = vpop.f32.mrb[0].mxu0
    %198 = vmatprep.mubr.bf16.mxu0 0
    %199 = vmatmul.mubr.bf16.gmra.mrb[0].mxu0 %v156
    %v200 = vpop.f32.mrb[0].mxu0
    %v201 = vadd.f32 0.0, %v200
    %v202 = vpop.f32.mrb[0].mxu0
    %v203 = vpop.f32.mrb[0].mxu0
    %v204 = vadd.f32 0.0, %v203
    %v205 = vpop.f32.mrb[0].mxu0
    %206 = vdwg.mxu0
    %v211 = vunpack.c.l.b16 %v82
    %v212 = vunpack.c.l.b16 %v83
    %v213 = vunpack.c.l.b16 %v84
    %v214 = vunpack.c.l.b16 %v85
    %v215 = vpack.c.b16 %v212, %v211
    %v216 = vpack.c.b16 %v214, %v213
    %v220 = vsel %vm74, %v109, 0
    %v223 = vsel %vm74, %v112, 0
    %225 = vmatprep.subr.bf16.mxu0 0
    %226 = vmatpush1.bf16.msra.mxu0 %v215
    %227 = vmatprep.subr.bf16.mxu0 0
    %228 = vmatpush1.bf16.msra.mxu0 %v216
    %229 = vmatprep.subr.bf16.mxu0 0
    %230 = vmatpush1.bf16.msra.mxu0 0
    %231 = vmatprep.subr.bf16.mxu0 0
    %232 = vmatpush1.bf16.msra.mxu0 0
    %233 = vmatprep.subr.bf16.mxu0 0
    %234 = vmatpush1.bf16.msra.mxu0 0
    %235 = vmatprep.subr.bf16.mxu0 0
    %236 = vmatpush1.bf16.msra.mxu0 0
    %237 = vmatprep.subr.bf16.mxu0 0
    %238 = vmatpush1.bf16.msra.mxu0 0
    %239 = vmatprep.subr.bf16.mxu0 0
    %240 = vmatpush1.bf16.msra.mxu0 0
    %241 = vmatprep.subr.bf16.mxu0 0
    %242 = vmatpush1.bf16.msra.mxu0 0
    %243 = vmatprep.subr.bf16.mxu0 0
    %244 = vmatpush1.bf16.msra.mxu0 0
    %245 = vmatprep.subr.bf16.mxu0 0
    %246 = vmatpush1.bf16.msra.mxu0 0
    %247 = vmatprep.subr.bf16.mxu0 0
    %248 = vmatpush1.bf16.msra.mxu0 0
    %249 = vmatprep.subr.bf16.mxu0 0
    %250 = vmatpush1.bf16.msra.mxu0 0
    %251 = vmatprep.subr.bf16.mxu0 0
    %252 = vmatpush1.bf16.msra.mxu0 0
    %253 = vmatprep.subr.bf16.mxu0 0
    %254 = vmatpush1.bf16.msra.mxu0 0
    %255 = vmatprep.subr.bf16.mxu0 0
    %256 = vmatpush1.bf16.msra.mxu0 0
    %257 = vmatprep.mubr.bf16.mxu0 0
    %258 = vmatmul.mubr.bf16.gmra.mrb[0].mxu0 %v220
    %v259 = vpop.f32.mrb[0].mxu0
    %v260 = vadd.f32 %v193, %v259
    %v261 = vpop.f32.mrb[0].mxu0
    %v262 = vpop.f32.mrb[0].mxu0
    %v263 = vadd.f32 %v196, %v262
    %v264 = vpop.f32.mrb[0].mxu0
    %265 = vmatprep.mubr.bf16.mxu0 0
    %266 = vmatmul.mubr.bf16.gmra.mrb[0].mxu0 %v223
    %v267 = vpop.f32.mrb[0].mxu0
    %v268 = vadd.f32 %v201, %v267
    %v269 = vpop.f32.mrb[0].mxu0
    %v270 = vpop.f32.mrb[0].mxu0
    %v271 = vadd.f32 %v204, %v270
    %v272 = vpop.f32.mrb[0].mxu0
    %273 = vdwg.mxu0
    %v278 = vunpack.c.l.b16 %v90
    %v279 = vunpack.c.l.b16 %v91
    %v280 = vunpack.c.l.b16 %v92
    %v281 = vunpack.c.l.b16 %v93
    %v282 = vpack.c.b16 %v279, %v278
    %v283 = vpack.c.b16 %v281, %v280
    %v287 = vsel %vm74, %v94, 0
    %v290 = vsel %vm74, %v95, 0
    %292 = vmatprep.subr.bf16.mxu0 0
    %293 = vmatpush1.bf16.msra.mxu0 %v282
    %294 = vmatprep.subr.bf16.mxu0 0
    %295 = vmatpush1.bf16.msra.mxu0 %v283
    %296 = vmatprep.subr.bf16.mxu0 0
    %297 = vmatpush1.bf16.msra.mxu0 0
    %298 = vmatprep.subr.bf16.mxu0 0
    %299 = vmatpush1.bf16.msra.mxu0 0
    %300 = vmatprep.subr.bf16.mxu0 0
    %301 = vmatpush1.bf16.msra.mxu0 0
    %302 = vmatprep.subr.bf16.mxu0 0
    %303 = vmatpush1.bf16.msra.mxu0 0
    %304 = vmatprep.subr.bf16.mxu0 0
    %305 = vmatpush1.bf16.msra.mxu0 0
    %306 = vmatprep.subr.bf16.mxu0 0
    %307 = vmatpush1.bf16.msra.mxu0 0
    %308 = vmatprep.subr.bf16.mxu0 0
    %309 = vmatpush1.bf16.msra.mxu0 0
    %310 = vmatprep.subr.bf16.mxu0 0
    %311 = vmatpush1.bf16.msra.mxu0 0
    %312 = vmatprep.subr.bf16.mxu0 0
    %313 = vmatpush1.bf16.msra.mxu0 0
    %314 = vmatprep.subr.bf16.mxu0 0
    %315 = vmatpush1.bf16.msra.mxu0 0
    %316 = vmatprep.subr.bf16.mxu0 0
    %317 = vmatpush1.bf16.msra.mxu0 0
    %318 = vmatprep.subr.bf16.mxu0 0
    %319 = vmatpush1.bf16.msra.mxu0 0
    %320 = vmatprep.subr.bf16.mxu0 0
    %321 = vmatpush1.bf16.msra.mxu0 0
    %322 = vmatprep.subr.bf16.mxu0 0
    %323 = vmatpush1.bf16.msra.mxu0 0
    %324 = vmatprep.mubr.bf16.mxu0 0
    %325 = vmatmul.mubr.bf16.gmra.mrb[0].mxu0 %v287
    %v326 = vpop.f32.mrb[0].mxu0
    %v327 = vadd.f32 0.0, %v326
    %v328 = vpop.f32.mrb[0].mxu0
    %v329 = vpop.f32.mrb[0].mxu0
    %v330 = vadd.f32 0.0, %v329
    %v331 = vpop.f32.mrb[0].mxu0
    %332 = vmatprep.mubr.bf16.mxu0 0
    %333 = vmatmul.mubr.bf16.gmra.mrb[0].mxu0 %v290
    %v334 = vpop.f32.mrb[0].mxu0
    %v335 = vadd.f32 0.0, %v334
    %v336 = vpop.f32.mrb[0].mxu0
    %v337 = vpop.f32.mrb[0].mxu0
    %v338 = vadd.f32 0.0, %v337
    %v339 = vpop.f32.mrb[0].mxu0
    %340 = vdwg.mxu0
    %v341 = vadd.f32 %v260, %v327
    %v342 = vadd.f32 %v263, %v330
    %v343 = vadd.f32 %v268, %v335
    %v344 = vadd.f32 %v271, %v338
    %v345 = vlaneseq
    %v346 = vshrl.u32 %v345, 7
    %v347 = vsub.s32 0, %v346
    %v348 = vrot.slane %v81, %v347
    %v349 = vadd.f32 %v341, %v348
    %v350 = vadd.f32 %v342, %v348
    %v351 = vadd.f32 %v343, %v348
    %v352 = vadd.f32 %v344, %v348
    %v353 = vsel %vm74, %v349, 0.0
    %354 = vadd.xlane.f32.xlu0 %v353
    %v355 = vpop.xlane.xlu0 %354
    %v356 = vsel %vm74, %v350, 0.0
    %357 = vadd.xlane.f32.xlu0 %v356
    %v358 = vpop.xlane.xlu0 %357
    %v359 = vsel %vm74, %v351, 0.0
    %360 = vadd.xlane.f32.xlu0 %v359
    %v361 = vpop.xlane.xlu0 %360
    %v362 = vsel %vm74, %v352, 0.0
    %363 = vadd.xlane.f32.xlu0 %v362
    %v364 = vpop.xlane.xlu0 %363
    %v365 = vrcp.pop 32.0
    %v366 = vmul.f32 %v355, %v365
    %v367 = vmul.f32 %v358, %v365
    %v368 = vmul.f32 %v361, %v365
    %v369 = vmul.f32 %v364, %v365
    %v370 = vsub.f32 %v349, %v366
    %v371 = vsub.f32 %v350, %v367
    %v372 = vsub.f32 %v351, %v368
    %v373 = vsub.f32 %v352, %v369
    %v374 = vmul.f32 %v370, %v370
    %v375 = vmul.f32 %v371, %v371
    %v376 = vmul.f32 %v372, %v372
    %v377 = vmul.f32 %v373, %v373
    %v378 = vsel %vm74, %v374, 0.0
    %379 = vadd.xlane.f32.xlu0 %v378
    %v380 = vpop.xlane.xlu0 %379
    %v381 = vsel %vm74, %v375, 0.0
    %382 = vadd.xlane.f32.xlu0 %v381
    %v383 = vpop.xlane.xlu0 %382
    %v384 = vsel %vm74, %v376, 0.0
    %385 = vadd.xlane.f32.xlu0 %v384
    %v386 = vpop.xlane.xlu0 %385
    %v387 = vsel %vm74, %v377, 0.0
    %388 = vadd.xlane.f32.xlu0 %v387
    %v389 = vpop.xlane.xlu0 %388
    %v390 = vmul.f32 %v380, %v365
    %v391 = vmul.f32 %v383, %v365
    %v392 = vmul.f32 %v386, %v365
    %v393 = vmul.f32 %v389, %v365
    %v394 = vadd.f32 %v390, 1e-08
    %v395 = vadd.f32 %v391, 1e-08
    %v396 = vadd.f32 %v392, 1e-08
    %v397 = vadd.f32 %v393, 1e-08
    %v398 = vrsqrt.pop %v394
    %v399 = vrsqrt.pop %v395
    %v400 = vrsqrt.pop %v396
    %v401 = vrsqrt.pop %v397
    %v402 = vmul.f32 %v370, %v398
    %v403 = vmul.f32 %v371, %v399
    %v404 = vmul.f32 %v372, %v400
    %v405 = vmul.f32 %v373, %v401
    %v406 = vlaneseq
    %v407 = vshrl.u32 %v406, 7
    %v408 = vsub.s32 1, %v407
    %v409 = vrot.slane %v81, %v408
    %v410 = vmul.f32 %v402, %v409
    %v411 = vmul.f32 %v403, %v409
    %v412 = vmul.f32 %v404, %v409
    %v413 = vmul.f32 %v405, %v409
    %v414 = vlaneseq
    %v415 = vshrl.u32 %v414, 7
    %v416 = vsub.s32 2, %v415
    %v417 = vrot.slane %v81, %v416
    %v418 = vadd.f32 %v410, %v417
    %v419 = vadd.f32 %v411, %v417
    %v420 = vadd.f32 %v412, %v417
    %v421 = vadd.f32 %v413, %v417
    %v422 = vmax.f32 %v418, 0.0
    %v423 = vmax.f32 %v419, 0.0
    %v424 = vmax.f32 %v420, 0.0
    %v425 = vmax.f32 %v421, 0.0
    %v426 = vlaneseq
    %v427 = vshrl.u32 %v426, 7
    %v428 = vsub.s32 3, %v427
    %v429 = vrot.slane %v81, %v428
    %v430 = vmul.f32 %v422, %v429
    %v431 = vmul.f32 %v423, %v429
    %v432 = vmul.f32 %v424, %v429
    %v433 = vmul.f32 %v425, %v429
    %v434 = vld [vmem:[#allocation8] sm:$0xf]
    %v435 = vld [vmem:[#allocation8 + $0x4] sm:$0xf]
    %v436 = vld [vmem:[#allocation8 + $0x8] sm:$0xf]
    %v437 = vld [vmem:[#allocation8 + $0xc] sm:$0xf]
    %v438 = vld [vmem:[#allocation8 + $0x10] sm:$0xf]
    %v439 = vld [vmem:[#allocation8 + $0x14] sm:$0xf]
    %v440 = vld [vmem:[#allocation8 + $0x18] sm:$0xf]
    %v441 = vld [vmem:[#allocation8 + $0x1c] sm:$0xf]
    %v442 = vld [vmem:[#allocation8 + $0x20] sm:$0xf]
    %v443 = vld [vmem:[#allocation8 + $0x24] sm:$0xf]
    %v444 = vld [vmem:[#allocation8 + $0x28] sm:$0xf]
    %v445 = vld [vmem:[#allocation8 + $0x2c] sm:$0xf]
    %v446 = vpack.c.bf16 %v431, %v430
    %v447 = vpack.c.bf16 %v433, %v432
    %448 = vst.msk [vmem:[#allocation2 + $0x8] sm:$0xff] %vm74, %v446
    %449 = vst.msk [vmem:[#allocation2 + $0x18] sm:$0xff] %vm74, %v447
    %v450 = vld [vmem:[#allocation2] sm:$0xc0]
    %v451 = vld [vmem:[#allocation2 + $0x8] sm:$0x3f]
    %v452 = vld [vmem:[#allocation2 + $0x10] sm:$0xc0]
    %v453 = vld [vmem:[#allocation2 + $0x18] sm:$0x3f]
    %vm458 = vcmask 1041408
    %v459 = vrot.slane %v450, 6
    %v460 = vrot.slane %v451, 6
    %v461 = vsel %vm458, %v459, %v460
    %v462 = vrot.slane %v452, 6
    %v463 = vrot.slane %v453, 6
    %v464 = vsel %vm458, %v462, %v463
    %v465 = vld [vmem:[#allocation2] sm:$0x80]
    %v466 = vld [vmem:[#allocation2 + $0x8] sm:$0x7f]
    %v467 = vld [vmem:[#allocation2 + $0x10] sm:$0x80]
    %v468 = vld [vmem:[#allocation2 + $0x18] sm:$0x7f]
    %v473 = vrot.slane %v465, 7
    %v474 = vrot.slane %v466, 7
    %v475 = vsel %vm106, %v473, %v474
    %v476 = vrot.slane %v467, 7
    %v477 = vrot.slane %v468, 7
    %v478 = vsel %vm106, %v476, %v477
    %v483 = vunpack.c.l.b16 %v438
    %v484 = vunpack.c.l.b16 %v439
    %v485 = vunpack.c.l.b16 %v440
    %v486 = vunpack.c.l.b16 %v441
    %v487 = vpack.c.b16 %v484, %v483
    %v488 = vpack.c.b16 %v486, %v485
    %v492 = vsel %vm74, %v475, 0
    %v495 = vsel %vm74, %v478, 0
    %497 = vmatprep.subr.bf16.mxu0 0
    %498 = vmatpush1.bf16.msra.mxu0 %v487
    %499 = vmatprep.subr.bf16.mxu0 0
    %500 = vmatpush1.bf16.msra.mxu0 %v488
    %501 = vmatprep.subr.bf16.mxu0 0
    %502 = vmatpush1.bf16.msra.mxu0 0
    %503 = vmatprep.subr.bf16.mxu0 0
    %504 = vmatpush1.bf16.msra.mxu0 0
    %505 = vmatprep.subr.bf16.mxu0 0
    %506 = vmatpush1.bf16.msra.mxu0 0
    %507 = vmatprep.subr.bf16.mxu0 0
    %508 = vmatpush1.bf16.msra.mxu0 0
    %509 = vmatprep.subr.bf16.mxu0 0
    %510 = vmatpush1.bf16.msra.mxu0 0
    %511 = vmatprep.subr.bf16.mxu0 0
    %512 = vmatpush1.bf16.msra.mxu0 0
    %513 = vmatprep.subr.bf16.mxu0 0
    %514 = vmatpush1.bf16.msra.mxu0 0
    %515 = vmatprep.subr.bf16.mxu0 0
    %516 = vmatpush1.bf16.msra.mxu0 0
    %517 = vmatprep.subr.bf16.mxu0 0
    %518 = vmatpush1.bf16.msra.mxu0 0
    %519 = vmatprep.subr.bf16.mxu0 0
    %520 = vmatpush1.bf16.msra.mxu0 0
    %521 = vmatprep.subr.bf16.mxu0 0
    %522 = vmatpush1.bf16.msra.mxu0 0
    %523 = vmatprep.subr.bf16.mxu0 0
    %524 = vmatpush1.bf16.msra.mxu0 0
    %525 = vmatprep.subr.bf16.mxu0 0
    %526 = vmatpush1.bf16.msra.mxu0 0
    %527 = vmatprep.subr.bf16.mxu0 0
    %528 = vmatpush1.bf16.msra.mxu0 0
    %529 = vmatprep.mubr.bf16.mxu0 0
    %530 = vmatmul.mubr.bf16.gmra.mrb[0].mxu0 %v492
    %v531 = vpop.f32.mrb[0].mxu0
    %v532 = vadd.f32 0.0, %v531
    %v533 = vpop.f32.mrb[0].mxu0
    %v534 = vpop.f32.mrb[0].mxu0
    %v535 = vadd.f32 0.0, %v534
    %v536 = vpop.f32.mrb[0].mxu0
    %537 = vmatprep.mubr.bf16.mxu0 0
    %538 = vmatmul.mubr.bf16.gmra.mrb[0].mxu0 %v495
    %v539 = vpop.f32.mrb[0].mxu0
    %v540 = vadd.f32 0.0, %v539
    %v541 = vpop.f32.mrb[0].mxu0
    %v542 = vpop.f32.mrb[0].mxu0
    %v543 = vadd.f32 0.0, %v542
    %v544 = vpop.f32.mrb[0].mxu0
    %545 = vdwg.mxu0
    %v550 = vunpack.c.l.b16 %v434
    %v551 = vunpack.c.l.b16 %v435
    %v552 = vunpack.c.l.b16 %v436
    %v553 = vunpack.c.l.b16 %v437
    %v554 = vpack.c.b16 %v551, %v550
    %v555 = vpack.c.b16 %v553, %v552
    %v559 = vsel %vm74, %v461, 0
    %v562 = vsel %vm74, %v464, 0
    %564 = vmatprep.subr.bf16.mxu0 0
    %565 = vmatpush1.bf16.msra.mxu0 %v554
    %566 = vmatprep.subr.bf16.mxu0 0
    %567 = vmatpush1.bf16.msra.mxu0 %v555
    %568 = vmatprep.subr.bf16.mxu0 0
    %569 = vmatpush1.bf16.msra.mxu0 0
    %570 = vmatprep.subr.bf16.mxu0 0
    %571 = vmatpush1.bf16.msra.mxu0 0
    %572 = vmatprep.subr.bf16.mxu0 0
    %573 = vmatpush1.bf16.msra.mxu0 0
    %574 = vmatprep.subr.bf16.mxu0 0
    %575 = vmatpush1.bf16.msra.mxu0 0
    %576 = vmatprep.subr.bf16.mxu0 0
    %577 = vmatpush1.bf16.msra.mxu0 0
    %578 = vmatprep.subr.bf16.mxu0 0
    %579 = vmatpush1.bf16.msra.mxu0 0
    %580 = vmatprep.subr.bf16.mxu0 0
    %581 = vmatpush1.bf16.msra.mxu0 0
    %582 = vmatprep.subr.bf16.mxu0 0
    %583 = vmatpush1.bf16.msra.mxu0 0
    %584 = vmatprep.subr.bf16.mxu0 0
    %585 = vmatpush1.bf16.msra.mxu0 0
    %586 = vmatprep.subr.bf16.mxu0 0
    %587 = vmatpush1.bf16.msra.mxu0 0
    %588 = vmatprep.subr.bf16.mxu0 0
    %589 = vmatpush1.bf16.msra.mxu0 0
    %590 = vmatprep.subr.bf16.mxu0 0
    %591 = vmatpush1.bf16.msra.mxu0 0
    %592 = vmatprep.subr.bf16.mxu0 0
    %593 = vmatpush1.bf16.msra.mxu0 0
    %594 = vmatprep.subr.bf16.mxu0 0
    %595 = vmatpush1.bf16.msra.mxu0 0
    %596 = vmatprep.mubr.bf16.mxu0 0
    %597 = vmatmul.mubr.bf16.gmra.mrb[0].mxu0 %v559
    %v598 = vpop.f32.mrb[0].mxu0
    %v599 = vadd.f32 %v532, %v598
    %v600 = vpop.f32.mrb[0].mxu0
    %v601 = vpop.f32.mrb[0].mxu0
    %v602 = vadd.f32 %v535, %v601
    %v603 = vpop.f32.mrb[0].mxu0
    %604 = vmatprep.mubr.bf16.mxu0 0
    %605 = vmatmul.mubr.bf16.gmra.mrb[0].mxu0 %v562
    %v606 = vpop.f32.mrb[0].mxu0
    %v607 = vadd.f32 %v540, %v606
    %v608 = vpop.f32.mrb[0].mxu0
    %v609 = vpop.f32.mrb[0].mxu0
    %v610 = vadd.f32 %v543, %v609
    %v611 = vpop.f32.mrb[0].mxu0
    %612 = vdwg.mxu0
    %v617 = vunpack.c.l.b16 %v442
    %v618 = vunpack.c.l.b16 %v443
    %v619 = vunpack.c.l.b16 %v444
    %v620 = vunpack.c.l.b16 %v445
    %v621 = vpack.c.b16 %v618, %v617
    %v622 = vpack.c.b16 %v620, %v619
    %v626 = vsel %vm74, %v446, 0
    %v629 = vsel %vm74, %v447, 0
    %631 = vmatprep.subr.bf16.mxu0 0
    %632 = vmatpush1.bf16.msra.mxu0 %v621
    %633 = vmatprep.subr.bf16.mxu0 0
    %634 = vmatpush1.bf16.msra.mxu0 %v622
    %635 = vmatprep.subr.bf16.mxu0 0
    %636 = vmatpush1.bf16.msra.mxu0 0
    %637 = vmatprep.subr.bf16.mxu0 0
    %638 = vmatpush1.bf16.msra.mxu0 0
    %639 = vmatprep.subr.bf16.mxu0 0
    %640 = vmatpush1.bf16.msra.mxu0 0
    %641 = vmatprep.subr.bf16.mxu0 0
    %642 = vmatpush1.bf16.msra.mxu0 0
    %643 = vmatprep.subr.bf16.mxu0 0
    %644 = vmatpush1.bf16.msra.mxu0 0
    %645 = vmatprep.subr.bf16.mxu0 0
    %646 = vmatpush1.bf16.msra.mxu0 0
    %647 = vmatprep.subr.bf16.mxu0 0
    %648 = vmatpush1.bf16.msra.mxu0 0
    %649 = vmatprep.subr.bf16.mxu0 0
    %650 = vmatpush1.bf16.msra.mxu0 0
    %651 = vmatprep.subr.bf16.mxu0 0
    %652 = vmatpush1.bf16.msra.mxu0 0
    %653 = vmatprep.subr.bf16.mxu0 0
    %654 = vmatpush1.bf16.msra.mxu0 0
    %655 = vmatprep.subr.bf16.mxu0 0
    %656 = vmatpush1.bf16.msra.mxu0 0
    %657 = vmatprep.subr.bf16.mxu0 0
    %658 = vmatpush1.bf16.msra.mxu0 0
    %659 = vmatprep.subr.bf16.mxu0 0
    %660 = vmatpush1.bf16.msra.mxu0 0
    %661 = vmatprep.subr.bf16.mxu0 0
    %662 = vmatpush1.bf16.msra.mxu0 0
    %663 = vmatprep.mubr.bf16.mxu0 0
    %664 = vmatmul.mubr.bf16.gmra.mrb[0].mxu0 %v626
    %v665 = vpop.f32.mrb[0].mxu0
    %v666 = vadd.f32 0.0, %v665
    %v667 = vpop.f32.mrb[0].mxu0
    %v668 = vpop.f32.mrb[0].mxu0
    %v669 = vadd.f32 0.0, %v668
    %v670 = vpop.f32.mrb[0].mxu0
    %671 = vmatprep.mubr.bf16.mxu0 0
    %672 = vmatmul.mubr.bf16.gmra.mrb[0].mxu0 %v629
    %v673 = vpop.f32.mrb[0].mxu0
    %v674 = vadd.f32 0.0, %v673
    %v675 = vpop.f32.mrb[0].mxu0
    %v676 = vpop.f32.mrb[0].mxu0
    %v677 = vadd.f32 0.0, %v676
    %v678 = vpop.f32.mrb[0].mxu0
    %679 = vdwg.mxu0
    %v680 = vadd.f32 %v599, %v666
    %v681 = vadd.f32 %v602, %v669
    %v682 = vadd.f32 %v607, %v674
    %v683 = vadd.f32 %v610, %v677
    %v684 = vlaneseq
    %v685 = vshrl.u32 %v684, 7
    %v686 = vsub.s32 4, %v685
    %v687 = vrot.slane %v81, %v686
    %v688 = vadd.f32 %v680, %v687
    %v689 = vadd.f32 %v681, %v687
    %v690 = vadd.f32 %v682, %v687
    %v691 = vadd.f32 %v683, %v687
    %v692 = vsel %vm74, %v688, 0.0
    %693 = vadd.xlane.f32.xlu0 %v692
    %v694 = vpop.xlane.xlu0 %693
    %v695 = vsel %vm74, %v689, 0.0
    %696 = vadd.xlane.f32.xlu0 %v695
    %v697 = vpop.xlane.xlu0 %696
    %v698 = vsel %vm74, %v690, 0.0
    %699 = vadd.xlane.f32.xlu0 %v698
    %v700 = vpop.xlane.xlu0 %699
    %v701 = vsel %vm74, %v691, 0.0
    %702 = vadd.xlane.f32.xlu0 %v701
    %v703 = vpop.xlane.xlu0 %702
    %v704 = vmul.f32 %v694, %v365
    %v705 = vmul.f32 %v697, %v365
    %v706 = vmul.f32 %v700, %v365
    %v707 = vmul.f32 %v703, %v365
    %v708 = vsub.f32 %v688, %v704
    %v709 = vsub.f32 %v689, %v705
    %v710 = vsub.f32 %v690, %v706
    %v711 = vsub.f32 %v691, %v707
    %v712 = vmul.f32 %v708, %v708
    %v713 = vmul.f32 %v709, %v709
    %v714 = vmul.f32 %v710, %v710
    %v715 = vmul.f32 %v711, %v711
    %v716 = vsel %vm74, %v712, 0.0
    %717 = vadd.xlane.f32.xlu0 %v716
    %v718 = vpop.xlane.xlu0 %717
    %v719 = vsel %vm74, %v713, 0.0
    %720 = vadd.xlane.f32.xlu0 %v719
    %v721 = vpop.xlane.xlu0 %720
    %v722 = vsel %vm74, %v714, 0.0
    %723 = vadd.xlane.f32.xlu0 %v722
    %v724 = vpop.xlane.xlu0 %723
    %v725 = vsel %vm74, %v715, 0.0
    %726 = vadd.xlane.f32.xlu0 %v725
    %v727 = vpop.xlane.xlu0 %726
    %v728 = vmul.f32 %v718, %v365
    %v729 = vmul.f32 %v721, %v365
    %v730 = vmul.f32 %v724, %v365
    %v731 = vmul.f32 %v727, %v365
    %v732 = vadd.f32 %v728, 1e-08
    %v733 = vadd.f32 %v729, 1e-08
    %v734 = vadd.f32 %v730, 1e-08
    %v735 = vadd.f32 %v731, 1e-08
    %v736 = vrsqrt.pop %v732
    %v737 = vrsqrt.pop %v733
    %v738 = vrsqrt.pop %v734
    %v739 = vrsqrt.pop %v735
    %v740 = vmul.f32 %v708, %v736
    %v741 = vmul.f32 %v709, %v737
    %v742 = vmul.f32 %v710, %v738
    %v743 = vmul.f32 %v711, %v739
    %v744 = vlaneseq
    %v745 = vshrl.u32 %v744, 7
    %v746 = vsub.s32 5, %v745
    %v747 = vrot.slane %v81, %v746
    %v748 = vmul.f32 %v740, %v747
    %v749 = vmul.f32 %v741, %v747
    %v750 = vmul.f32 %v742, %v747
    %v751 = vmul.f32 %v743, %v747
    %v752 = vlaneseq
    %v753 = vshrl.u32 %v752, 7
    %v754 = vsub.s32 6, %v753
    %v755 = vrot.slane %v81, %v754
    %v756 = vadd.f32 %v748, %v755
    %v757 = vadd.f32 %v749, %v755
    %v758 = vadd.f32 %v750, %v755
    %v759 = vadd.f32 %v751, %v755
    %v760 = vmax.f32 %v756, 0.0
    %v761 = vmax.f32 %v757, 0.0
    %v762 = vmax.f32 %v758, 0.0
    %v763 = vmax.f32 %v759, 0.0
    %v764 = vlaneseq
    %v765 = vshrl.u32 %v764, 7
    %v766 = vsub.s32 7, %v765
    %v767 = vrot.slane %v81, %v766
    %v768 = vmul.f32 %v760, %v767
    %v769 = vmul.f32 %v761, %v767
    %v770 = vmul.f32 %v762, %v767
    %v771 = vmul.f32 %v763, %v767
    %v772 = vadd.f32 %v768, %v77
    %v773 = vadd.f32 %v769, %v78
    %v774 = vadd.f32 %v770, %v79
    %v775 = vadd.f32 %v771, %v80
    %s776 = scalar_lea.vmem [#allocation9], 8
    %v777 = vld [vmem:[%s776] sm:$0xff]
    %s778 = scalar_lea.vmem [#allocation6], 48
    %v779 = vld [vmem:[%s778] sm:$0xf]
    %v780 = vld [vmem:[%s778 + $0x4] sm:$0xf]
    %v781 = vld [vmem:[%s778 + $0x8] sm:$0xf]
    %v782 = vld [vmem:[%s778 + $0xc] sm:$0xf]
    %v783 = vld [vmem:[%s778 + $0x10] sm:$0xf]
    %v784 = vld [vmem:[%s778 + $0x14] sm:$0xf]
    %v785 = vld [vmem:[%s778 + $0x18] sm:$0xf]
    %v786 = vld [vmem:[%s778 + $0x1c] sm:$0xf]
    %v787 = vld [vmem:[%s778 + $0x20] sm:$0xf]
    %v788 = vld [vmem:[%s778 + $0x24] sm:$0xf]
    %v789 = vld [vmem:[%s778 + $0x28] sm:$0xf]
    %v790 = vld [vmem:[%s778 + $0x2c] sm:$0xf]
    %v791 = vpack.c.bf16 %v773, %v772
    %v792 = vpack.c.bf16 %v775, %v774
    %793 = vst.msk [vmem:[#allocation2 + $0x8] sm:$0xff] %vm74, %v791
    %794 = vst.msk [vmem:[#allocation2 + $0x18] sm:$0xff] %vm74, %v792
    %v795 = vld [vmem:[#allocation2] sm:$0xc0]
    %v796 = vld [vmem:[#allocation2 + $0x8] sm:$0x3f]
    %v797 = vld [vmem:[#allocation2 + $0x10] sm:$0xc0]
    %v798 = vld [vmem:[#allocation2 + $0x18] sm:$0x3f]
    %v803 = vrot.slane %v795, 6
    %v804 = vrot.slane %v796, 6
    %v805 = vsel %vm458, %v803, %v804
    %v806 = vrot.slane %v797, 6
    %v807 = vrot.slane %v798, 6
    %v808 = vsel %vm458, %v806, %v807
    %v809 = vld [vmem:[#allocation2] sm:$0x80]
    %v810 = vld [vmem:[#allocation2 + $0x8] sm:$0x7f]
    %v811 = vld [vmem:[#allocation2 + $0x10] sm:$0x80]
    %v812 = vld [vmem:[#allocation2 + $0x18] sm:$0x7f]
    %v817 = vrot.slane %v809, 7
    %v818 = vrot.slane %v810, 7
    %v819 = vsel %vm106, %v817, %v818
    %v820 = vrot.slane %v811, 7
    %v821 = vrot.slane %v812, 7
    %v822 = vsel %vm106, %v820, %v821
    %v827 = vunpack.c.l.b16 %v783
    %v828 = vunpack.c.l.b16 %v784
    %v829 = vunpack.c.l.b16 %v785
    %v830 = vunpack.c.l.b16 %v786
    %v831 = vpack.c.b16 %v828, %v827
    %v832 = vpack.c.b16 %v830, %v829
    %v836 = vsel %vm74, %v819, 0
    %v839 = vsel %vm74, %v822, 0
    %841 = vmatprep.subr.bf16.mxu0 0
    %842 = vmatpush1.bf16.msra.mxu0 %v831
    %843 = vmatprep.subr.bf16.mxu0 0
    %844 = vmatpush1.bf16.msra.mxu0 %v832
    %845 = vmatprep.subr.bf16.mxu0 0
    %846 = vmatpush1.bf16.msra.mxu0 0
    %847 = vmatprep.subr.bf16.mxu0 0
    %848 = vmatpush1.bf16.msra.mxu0 0
    %849 = vmatprep.subr.bf16.mxu0 0
    %850 = vmatpush1.bf16.msra.mxu0 0
    %851 = vmatprep.subr.bf16.mxu0 0
    %852 = vmatpush1.bf16.msra.mxu0 0
    %853 = vmatprep.subr.bf16.mxu0 0
    %854 = vmatpush1.bf16.msra.mxu0 0
    %855 = vmatprep.subr.bf16.mxu0 0
    %856 = vmatpush1.bf16.msra.mxu0 0
    %857 = vmatprep.subr.bf16.mxu0 0
    %858 = vmatpush1.bf16.msra.mxu0 0
    %859 = vmatprep.subr.bf16.mxu0 0
    %860 = vmatpush1.bf16.msra.mxu0 0
    %861 = vmatprep.subr.bf16.mxu0 0
    %862 = vmatpush1.bf16.msra.mxu0 0
    %863 = vmatprep.subr.bf16.mxu0 0
    %864 = vmatpush1.bf16.msra.mxu0 0
    %865 = vmatprep.subr.bf16.mxu0 0
    %866 = vmatpush1.bf16.msra.mxu0 0
    %867 = vmatprep.subr.bf16.mxu0 0
    %868 = vmatpush1.bf16.msra.mxu0 0
    %869 = vmatprep.subr.bf16.mxu0 0
    %870 = vmatpush1.bf16.msra.mxu0 0
    %871 = vmatprep.subr.bf16.mxu0 0
    %872 = vmatpush1.bf16.msra.mxu0 0
    %873 = vmatprep.mubr.bf16.mxu0 0
    %874 = vmatmul.mubr.bf16.gmra.mrb[0].mxu0 %v836
    %v875 = vpop.f32.mrb[0].mxu0
    %v876 = vadd.f32 0.0, %v875
    %v877 = vpop.f32.mrb[0].mxu0
    %v878 = vpop.f32.mrb[0].mxu0
    %v879 = vadd.f32 0.0, %v878
    %v880 = vpop.f32.mrb[0].mxu0
    %881 = vmatprep.mubr.bf16.mxu0 0
    %882 = vmatmul.mubr.bf16.gmra.mrb[0].mxu0 %v839
    %v883 = vpop.f32.mrb[0].mxu0
    %v884 = vadd.f32 0.0, %v883
    %v885 = vpop.f32.mrb[0].mxu0
    %v886 = vpop.f32.mrb[0].mxu0
    %v887 = vadd.f32 0.0, %v886
    %v888 = vpop.f32.mrb[0].mxu0
    %889 = vdwg.mxu0
    %v894 = vunpack.c.l.b16 %v779
    %v895 = vunpack.c.l.b16 %v780
    %v896 = vunpack.c.l.b16 %v781
    %v897 = vunpack.c.l.b16 %v782
    %v898 = vpack.c.b16 %v895, %v894
    %v899 = vpack.c.b16 %v897, %v896
    %v903 = vsel %vm74, %v805, 0
    %v906 = vsel %vm74, %v808, 0
    %908 = vmatprep.subr.bf16.mxu0 0
    %909 = vmatpush1.bf16.msra.mxu0 %v898
    %910 = vmatprep.subr.bf16.mxu0 0
    %911 = vmatpush1.bf16.msra.mxu0 %v899
    %912 = vmatprep.subr.bf16.mxu0 0
    %913 = vmatpush1.bf16.msra.mxu0 0
    %914 = vmatprep.subr.bf16.mxu0 0
    %915 = vmatpush1.bf16.msra.mxu0 0
    %916 = vmatprep.subr.bf16.mxu0 0
    %917 = vmatpush1.bf16.msra.mxu0 0
    %918 = vmatprep.subr.bf16.mxu0 0
    %919 = vmatpush1.bf16.msra.mxu0 0
    %920 = vmatprep.subr.bf16.mxu0 0
    %921 = vmatpush1.bf16.msra.mxu0 0
    %922 = vmatprep.subr.bf16.mxu0 0
    %923 = vmatpush1.bf16.msra.mxu0 0
    %924 = vmatprep.subr.bf16.mxu0 0
    %925 = vmatpush1.bf16.msra.mxu0 0
    %926 = vmatprep.subr.bf16.mxu0 0
    %927 = vmatpush1.bf16.msra.mxu0 0
    %928 = vmatprep.subr.bf16.mxu0 0
    %929 = vmatpush1.bf16.msra.mxu0 0
    %930 = vmatprep.subr.bf16.mxu0 0
    %931 = vmatpush1.bf16.msra.mxu0 0
    %932 = vmatprep.subr.bf16.mxu0 0
    %933 = vmatpush1.bf16.msra.mxu0 0
    %934 = vmatprep.subr.bf16.mxu0 0
    %935 = vmatpush1.bf16.msra.mxu0 0
    %936 = vmatprep.subr.bf16.mxu0 0
    %937 = vmatpush1.bf16.msra.mxu0 0
    %938 = vmatprep.subr.bf16.mxu0 0
    %939 = vmatpush1.bf16.msra.mxu0 0
    %940 = vmatprep.mubr.bf16.mxu0 0
    %941 = vmatmul.mubr.bf16.gmra.mrb[0].mxu0 %v903
    %v942 = vpop.f32.mrb[0].mxu0
    %v943 = vadd.f32 %v876, %v942
    %v944 = vpop.f32.mrb[0].mxu0
    %v945 = vpop.f32.mrb[0].mxu0
    %v946 = vadd.f32 %v879, %v945
    %v947 = vpop.f32.mrb[0].mxu0
    %948 = vmatprep.mubr.bf16.mxu0 0
    %949 = vmatmul.mubr.bf16.gmra.mrb[0].mxu0 %v906
    %v950 = vpop.f32.mrb[0].mxu0
    %v951 = vadd.f32 %v884, %v950
    %v952 = vpop.f32.mrb[0].mxu0
    %v953 = vpop.f32.mrb[0].mxu0
    %v954 = vadd.f32 %v887, %v953
    %v955 = vpop.f32.mrb[0].mxu0
    %956 = vdwg.mxu0
    %v961 = vunpack.c.l.b16 %v787
    %v962 = vunpack.c.l.b16 %v788
    %v963 = vunpack.c.l.b16 %v789
    %v964 = vunpack.c.l.b16 %v790
    %v965 = vpack.c.b16 %v962, %v961
    %v966 = vpack.c.b16 %v964, %v963
    %v970 = vsel %vm74, %v791, 0
    %v973 = vsel %vm74, %v792, 0
    %975 = vmatprep.subr.bf16.mxu0 0
    %976 = vmatpush1.bf16.msra.mxu0 %v965
    %977 = vmatprep.subr.bf16.mxu0 0
    %978 = vmatpush1.bf16.msra.mxu0 %v966
    %979 = vmatprep.subr.bf16.mxu0 0
    %980 = vmatpush1.bf16.msra.mxu0 0
    %981 = vmatprep.subr.bf16.mxu0 0
    %982 = vmatpush1.bf16.msra.mxu0 0
    %983 = vmatprep.subr.bf16.mxu0 0
    %984 = vmatpush1.bf16.msra.mxu0 0
    %985 = vmatprep.subr.bf16.mxu0 0
    %986 = vmatpush1.bf16.msra.mxu0 0
    %987 = vmatprep.subr.bf16.mxu0 0
    %988 = vmatpush1.bf16.msra.mxu0 0
    %989 = vmatprep.subr.bf16.mxu0 0
    %990 = vmatpush1.bf16.msra.mxu0 0
    %991 = vmatprep.subr.bf16.mxu0 0
    %992 = vmatpush1.bf16.msra.mxu0 0
    %993 = vmatprep.subr.bf16.mxu0 0
    %994 = vmatpush1.bf16.msra.mxu0 0
    %995 = vmatprep.subr.bf16.mxu0 0
    %996 = vmatpush1.bf16.msra.mxu0 0
    %997 = vmatprep.subr.bf16.mxu0 0
    %998 = vmatpush1.bf16.msra.mxu0 0
    %999 = vmatprep.subr.bf16.mxu0 0
    %1000 = vmatpush1.bf16.msra.mxu0 0
    %1001 = vmatprep.subr.bf16.mxu0 0
    %1002 = vmatpush1.bf16.msra.mxu0 0
    %1003 = vmatprep.subr.bf16.mxu0 0
    %1004 = vmatpush1.bf16.msra.mxu0 0
    %1005 = vmatprep.subr.bf16.mxu0 0
    %1006 = vmatpush1.bf16.msra.mxu0 0
    %1007 = vmatprep.mubr.bf16.mxu0 0
    %1008 = vmatmul.mubr.bf16.gmra.mrb[0].mxu0 %v970
    %v1009 = vpop.f32.mrb[0].mxu0
    %v1010 = vadd.f32 0.0, %v1009
    %v1011 = vpop.f32.mrb[0].mxu0
    %v1012 = vpop.f32.mrb[0].mxu0
    %v1013 = vadd.f32 0.0, %v1012
    %v1014 = vpop.f32.mrb[0].mxu0
    %1015 = vmatprep.mubr.bf16.mxu0 0
    %1016 = vmatmul.mubr.bf16.gmra.mrb[0].mxu0 %v973
    %v1017 = vpop.f32.mrb[0].mxu0
    %v1018 = vadd.f32 0.0, %v1017
    %v1019 = vpop.f32.mrb[0].mxu0
    %v1020 = vpop.f32.mrb[0].mxu0
    %v1021 = vadd.f32 0.0, %v1020
    %v1022 = vpop.f32.mrb[0].mxu0
    %1023 = vdwg.mxu0
    %v1024 = vadd.f32 %v943, %v1010
    %v1025 = vadd.f32 %v946, %v1013
    %v1026 = vadd.f32 %v951, %v1018
    %v1027 = vadd.f32 %v954, %v1021
    %v1028 = vlaneseq
    %v1029 = vshrl.u32 %v1028, 7
    %v1030 = vsub.s32 0, %v1029
    %v1031 = vrot.slane %v777, %v1030
    %v1032 = vadd.f32 %v1024, %v1031
    %v1033 = vadd.f32 %v1025, %v1031
    %v1034 = vadd.f32 %v1026, %v1031
    %v1035 = vadd.f32 %v1027, %v1031
    %v1036 = vsel %vm74, %v1032, 0.0
    %1037 = vadd.xlane.f32.xlu0 %v1036
    %v1038 = vpop.xlane.xlu0 %1037
    %v1039 = vsel %vm74, %v1033, 0.0
    %1040 = vadd.xlane.f32.xlu0 %v1039
    %v1041 = vpop.xlane.xlu0 %1040
    %v1042 = vsel %vm74, %v1034, 0.0
    %1043 = vadd.xlane.f32.xlu0 %v1042
    %v1044 = vpop.xlane.xlu0 %1043
    %v1045 = vsel %vm74, %v1035, 0.0
    %1046 = vadd.xlane.f32.xlu0 %v1045
    %v1047 = vpop.xlane.xlu0 %1046
    %v1048 = vmul.f32 %v1038, %v365
    %v1049 = vmul.f32 %v1041, %v365
    %v1050 = vmul.f32 %v1044, %v365
    %v1051 = vmul.f32 %v1047, %v365
    %v1052 = vsub.f32 %v1032, %v1048
    %v1053 = vsub.f32 %v1033, %v1049
    %v1054 = vsub.f32 %v1034, %v1050
    %v1055 = vsub.f32 %v1035, %v1051
    %v1056 = vmul.f32 %v1052, %v1052
    %v1057 = vmul.f32 %v1053, %v1053
    %v1058 = vmul.f32 %v1054, %v1054
    %v1059 = vmul.f32 %v1055, %v1055
    %v1060 = vsel %vm74, %v1056, 0.0
    %1061 = vadd.xlane.f32.xlu0 %v1060
    %v1062 = vpop.xlane.xlu0 %1061
    %v1063 = vsel %vm74, %v1057, 0.0
    %1064 = vadd.xlane.f32.xlu0 %v1063
    %v1065 = vpop.xlane.xlu0 %1064
    %v1066 = vsel %vm74, %v1058, 0.0
    %1067 = vadd.xlane.f32.xlu0 %v1066
    %v1068 = vpop.xlane.xlu0 %1067
    %v1069 = vsel %vm74, %v1059, 0.0
    %1070 = vadd.xlane.f32.xlu0 %v1069
    %v1071 = vpop.xlane.xlu0 %1070
    %v1072 = vmul.f32 %v1062, %v365
    %v1073 = vmul.f32 %v1065, %v365
    %v1074 = vmul.f32 %v1068, %v365
    %v1075 = vmul.f32 %v1071, %v365
    %v1076 = vadd.f32 %v1072, 1e-08
    %v1077 = vadd.f32 %v1073, 1e-08
    %v1078 = vadd.f32 %v1074, 1e-08
    %v1079 = vadd.f32 %v1075, 1e-08
    %v1080 = vrsqrt.pop %v1076
    %v1081 = vrsqrt.pop %v1077
    %v1082 = vrsqrt.pop %v1078
    %v1083 = vrsqrt.pop %v1079
    %v1084 = vmul.f32 %v1052, %v1080
    %v1085 = vmul.f32 %v1053, %v1081
    %v1086 = vmul.f32 %v1054, %v1082
    %v1087 = vmul.f32 %v1055, %v1083
    %v1088 = vlaneseq
    %v1089 = vshrl.u32 %v1088, 7
    %v1090 = vsub.s32 1, %v1089
    %v1091 = vrot.slane %v777, %v1090
    %v1092 = vmul.f32 %v1084, %v1091
    %v1093 = vmul.f32 %v1085, %v1091
    %v1094 = vmul.f32 %v1086, %v1091
    %v1095 = vmul.f32 %v1087, %v1091
    %v1096 = vlaneseq
    %v1097 = vshrl.u32 %v1096, 7
    %v1098 = vsub.s32 2, %v1097
    %v1099 = vrot.slane %v777, %v1098
    %v1100 = vadd.f32 %v1092, %v1099
    %v1101 = vadd.f32 %v1093, %v1099
    %v1102 = vadd.f32 %v1094, %v1099
    %v1103 = vadd.f32 %v1095, %v1099
    %v1104 = vmax.f32 %v1100, 0.0
    %v1105 = vmax.f32 %v1101, 0.0
    %v1106 = vmax.f32 %v1102, 0.0
    %v1107 = vmax.f32 %v1103, 0.0
    %v1108 = vlaneseq
    %v1109 = vshrl.u32 %v1108, 7
    %v1110 = vsub.s32 3, %v1109
    %v1111 = vrot.slane %v777, %v1110
    %v1112 = vmul.f32 %v1104, %v1111
    %v1113 = vmul.f32 %v1105, %v1111
    %v1114 = vmul.f32 %v1106, %v1111
    %v1115 = vmul.f32 %v1107, %v1111
    %s1116 = scalar_lea.vmem [#allocation8], 48
    %v1117 = vld [vmem:[%s1116] sm:$0xf]
    %v1118 = vld [vmem:[%s1116 + $0x4] sm:$0xf]
    %v1119 = vld [vmem:[%s1116 + $0x8] sm:$0xf]
    %v1120 = vld [vmem:[%s1116 + $0xc] sm:$0xf]
    %v1121 = vld [vmem:[%s1116 + $0x10] sm:$0xf]
    %v1122 = vld [vmem:[%s1116 + $0x14] sm:$0xf]
    %v1123 = vld [vmem:[%s1116 + $0x18] sm:$0xf]
    %v1124 = vld [vmem:[%s1116 + $0x1c] sm:$0xf]
    %v1125 = vld [vmem:[%s1116 + $0x20] sm:$0xf]
    %v1126 = vld [vmem:[%s1116 + $0x24] sm:$0xf]
    %v1127 = vld [vmem:[%s1116 + $0x28] sm:$0xf]
    %v1128 = vld [vmem:[%s1116 + $0x2c] sm:$0xf]
    %v1129 = vpack.c.bf16 %v1113, %v1112
    %v1130 = vpack.c.bf16 %v1115, %v1114
    %1131 = vst.msk [vmem:[#allocation2 + $0x8] sm:$0xff] %vm74, %v1129
    %1132 = vst.msk [vmem:[#allocation2 + $0x18] sm:$0xff] %vm74, %v1130
    %v1133 = vld [vmem:[#allocation2] sm:$0xf0]
    %v1134 = vld [vmem:[#allocation2 + $0x8] sm:$0xf]
    %v1135 = vld [vmem:[#allocation2 + $0x10] sm:$0xf0]
    %v1136 = vld [vmem:[#allocation2 + $0x18] sm:$0xf]
    %vm1141 = vcmask 1043456
    %v1142 = vrot.slane %v1133, 4
    %v1143 = vrot.slane %v1134, 4
    %v1144 = vsel %vm1141, %v1142, %v1143
    %v1145 = vrot.slane %v1135, 4
    %v1146 = vrot.slane %v1136, 4
    %v1147 = vsel %vm1141, %v1145, %v1146
    %v1148 = vld [vmem:[#allocation2] sm:$0xc0]
    %v1149 = vld [vmem:[#allocation2 + $0x8] sm:$0x3f]
    %v1150 = vld [vmem:[#allocation2 + $0x10] sm:$0xc0]
    %v1151 = vld [vmem:[#allocation2 + $0x18] sm:$0x3f]
    %v1156 = vrot.slane %v1148, 6
    %v1157 = vrot.slane %v1149, 6
    %v1158 = vsel %vm458, %v1156, %v1157
    %v1159 = vrot.slane %v1150, 6
    %v1160 = vrot.slane %v1151, 6
    %v1161 = vsel %vm458, %v1159, %v1160
    %v1166 = vunpack.c.l.b16 %v1121
    %v1167 = vunpack.c.l.b16 %v1122
    %v1168 = vunpack.c.l.b16 %v1123
    %v1169 = vunpack.c.l.b16 %v1124
    %v1170 = vpack.c.b16 %v1167, %v1166
    %v1171 = vpack.c.b16 %v1169, %v1168
    %v1175 = vsel %vm74, %v1158, 0
    %v1178 = vsel %vm74, %v1161, 0
    %1180 = vmatprep.subr.bf16.mxu0 0
    %1181 = vmatpush1.bf16.msra.mxu0 %v1170
    %1182 = vmatprep.subr.bf16.mxu0 0
    %1183 = vmatpush1.bf16.msra.mxu0 %v1171
    %1184 = vmatprep.subr.bf16.mxu0 0
    %1185 = vmatpush1.bf16.msra.mxu0 0
    %1186 = vmatprep.subr.bf16.mxu0 0
    %1187 = vmatpush1.bf16.msra.mxu0 0
    %1188 = vmatprep.subr.bf16.mxu0 0
    %1189 = vmatpush1.bf16.msra.mxu0 0
    %1190 = vmatprep.subr.bf16.mxu0 0
    %1191 = vmatpush1.bf16.msra.mxu0 0
    %1192 = vmatprep.subr.bf16.mxu0 0
    %1193 = vmatpush1.bf16.msra.mxu0 0
    %1194 = vmatprep.subr.bf16.mxu0 0
    %1195 = vmatpush1.bf16.msra.mxu0 0
    %1196 = vmatprep.subr.bf16.mxu0 0
    %1197 = vmatpush1.bf16.msra.mxu0 0
    %1198 = vmatprep.subr.bf16.mxu0 0
    %1199 = vmatpush1.bf16.msra.mxu0 0
    %1200 = vmatprep.subr.bf16.mxu0 0
    %1201 = vmatpush1.bf16.msra.mxu0 0
    %1202 = vmatprep.subr.bf16.mxu0 0
    %1203 = vmatpush1.bf16.msra.mxu0 0
    %1204 = vmatprep.subr.bf16.mxu0 0
    %1205 = vmatpush1.bf16.msra.mxu0 0
    %1206 = vmatprep.subr.bf16.mxu0 0
    %1207 = vmatpush1.bf16.msra.mxu0 0
    %1208 = vmatprep.subr.bf16.mxu0 0
    %1209 = vmatpush1.bf16.msra.mxu0 0
    %1210 = vmatprep.subr.bf16.mxu0 0
    %1211 = vmatpush1.bf16.msra.mxu0 0
    %1212 = vmatprep.mubr.bf16.mxu0 0
    %1213 = vmatmul.mubr.bf16.gmra.mrb[0].mxu0 %v1175
    %v1214 = vpop.f32.mrb[0].mxu0
    %v1215 = vadd.f32 0.0, %v1214
    %v1216 = vpop.f32.mrb[0].mxu0
    %v1217 = vpop.f32.mrb[0].mxu0
    %v1218 = vadd.f32 0.0, %v1217
    %v1219 = vpop.f32.mrb[0].mxu0
    %1220 = vmatprep.mubr.bf16.mxu0 0
    %1221 = vmatmul.mubr.bf16.gmra.mrb[0].mxu0 %v1178
    %v1222 = vpop.f32.mrb[0].mxu0
    %v1223 = vadd.f32 0.0, %v1222
    %v1224 = vpop.f32.mrb[0].mxu0
    %v1225 = vpop.f32.mrb[0].mxu0
    %v1226 = vadd.f32 0.0, %v1225
    %v1227 = vpop.f32.mrb[0].mxu0
    %1228 = vdwg.mxu0
    %v1233 = vunpack.c.l.b16 %v1117
    %v1234 = vunpack.c.l.b16 %v1118
    %v1235 = vunpack.c.l.b16 %v1119
    %v1236 = vunpack.c.l.b16 %v1120
    %v1237 = vpack.c.b16 %v1234, %v1233
    %v1238 = vpack.c.b16 %v1236, %v1235
    %v1242 = vsel %vm74, %v1144, 0
    %v1245 = vsel %vm74, %v1147, 0
    %1247 = vmatprep.subr.bf16.mxu0 0
    %1248 = vmatpush1.bf16.msra.mxu0 %v1237
    %1249 = vmatprep.subr.bf16.mxu0 0
    %1250 = vmatpush1.bf16.msra.mxu0 %v1238
    %1251 = vmatprep.subr.bf16.mxu0 0
    %1252 = vmatpush1.bf16.msra.mxu0 0
    %1253 = vmatprep.subr.bf16.mxu0 0
    %1254 = vmatpush1.bf16.msra.mxu0 0
    %1255 = vmatprep.subr.bf16.mxu0 0
    %1256 = vmatpush1.bf16.msra.mxu0 0
    %1257 = vmatprep.subr.bf16.mxu0 0
    %1258 = vmatpush1.bf16.msra.mxu0 0
    %1259 = vmatprep.subr.bf16.mxu0 0
    %1260 = vmatpush1.bf16.msra.mxu0 0
    %1261 = vmatprep.subr.bf16.mxu0 0
    %1262 = vmatpush1.bf16.msra.mxu0 0
    %1263 = vmatprep.subr.bf16.mxu0 0
    %1264 = vmatpush1.bf16.msra.mxu0 0
    %1265 = vmatprep.subr.bf16.mxu0 0
    %1266 = vmatpush1.bf16.msra.mxu0 0
    %1267 = vmatprep.subr.bf16.mxu0 0
    %1268 = vmatpush1.bf16.msra.mxu0 0
    %1269 = vmatprep.subr.bf16.mxu0 0
    %1270 = vmatpush1.bf16.msra.mxu0 0
    %1271 = vmatprep.subr.bf16.mxu0 0
    %1272 = vmatpush1.bf16.msra.mxu0 0
    %1273 = vmatprep.subr.bf16.mxu0 0
    %1274 = vmatpush1.bf16.msra.mxu0 0
    %1275 = vmatprep.subr.bf16.mxu0 0
    %1276 = vmatpush1.bf16.msra.mxu0 0
    %1277 = vmatprep.subr.bf16.mxu0 0
    %1278 = vmatpush1.bf16.msra.mxu0 0
    %1279 = vmatprep.mubr.bf16.mxu0 0
    %1280 = vmatmul.mubr.bf16.gmra.mrb[0].mxu0 %v1242
    %v1281 = vpop.f32.mrb[0].mxu0
    %v1282 = vadd.f32 %v1215, %v1281
    %v1283 = vpop.f32.mrb[0].mxu0
    %v1284 = vpop.f32.mrb[0].mxu0
    %v1285 = vadd.f32 %v1218, %v1284
    %v1286 = vpop.f32.mrb[0].mxu0
    %1287 = vmatprep.mubr.bf16.mxu0 0
    %1288 = vmatmul.mubr.bf16.gmra.mrb[0].mxu0 %v1245
    %v1289 = vpop.f32.mrb[0].mxu0
    %v1290 = vadd.f32 %v1223, %v1289
    %v1291 = vpop.f32.mrb[0].mxu0
    %v1292 = vpop.f32.mrb[0].mxu0
    %v1293 = vadd.f32 %v1226, %v1292
    %v1294 = vpop.f32.mrb[0].mxu0
    %1295 = vdwg.mxu0
    %v1300 = vunpack.c.l.b16 %v1125
    %v1301 = vunpack.c.l.b16 %v1126
    %v1302 = vunpack.c.l.b16 %v1127
    %v1303 = vunpack.c.l.b16 %v1128
    %v1304 = vpack.c.b16 %v1301, %v1300
    %v1305 = vpack.c.b16 %v1303, %v1302
    %v1309 = vsel %vm74, %v1129, 0
    %v1312 = vsel %vm74, %v1130, 0
    %1314 = vmatprep.subr.bf16.mxu0 0
    %1315 = vmatpush1.bf16.msra.mxu0 %v1304
    %1316 = vmatprep.subr.bf16.mxu0 0
    %1317 = vmatpush1.bf16.msra.mxu0 %v1305
    %1318 = vmatprep.subr.bf16.mxu0 0
    %1319 = vmatpush1.bf16.msra.mxu0 0
    %1320 = vmatprep.subr.bf16.mxu0 0
    %1321 = vmatpush1.bf16.msra.mxu0 0
    %1322 = vmatprep.subr.bf16.mxu0 0
    %1323 = vmatpush1.bf16.msra.mxu0 0
    %1324 = vmatprep.subr.bf16.mxu0 0
    %1325 = vmatpush1.bf16.msra.mxu0 0
    %1326 = vmatprep.subr.bf16.mxu0 0
    %1327 = vmatpush1.bf16.msra.mxu0 0
    %1328 = vmatprep.subr.bf16.mxu0 0
    %1329 = vmatpush1.bf16.msra.mxu0 0
    %1330 = vmatprep.subr.bf16.mxu0 0
    %1331 = vmatpush1.bf16.msra.mxu0 0
    %1332 = vmatprep.subr.bf16.mxu0 0
    %1333 = vmatpush1.bf16.msra.mxu0 0
    %1334 = vmatprep.subr.bf16.mxu0 0
    %1335 = vmatpush1.bf16.msra.mxu0 0
    %1336 = vmatprep.subr.bf16.mxu0 0
    %1337 = vmatpush1.bf16.msra.mxu0 0
    %1338 = vmatprep.subr.bf16.mxu0 0
    %1339 = vmatpush1.bf16.msra.mxu0 0
    %1340 = vmatprep.subr.bf16.mxu0 0
    %1341 = vmatpush1.bf16.msra.mxu0 0
    %1342 = vmatprep.subr.bf16.mxu0 0
    %1343 = vmatpush1.bf16.msra.mxu0 0
    %1344 = vmatprep.subr.bf16.mxu0 0
    %1345 = vmatpush1.bf16.msra.mxu0 0
    %1346 = vmatprep.mubr.bf16.mxu0 0
    %1347 = vmatmul.mubr.bf16.gmra.mrb[0].mxu0 %v1309
    %v1348 = vpop.f32.mrb[0].mxu0
    %v1349 = vadd.f32 0.0, %v1348
    %v1350 = vpop.f32.mrb[0].mxu0
    %v1351 = vpop.f32.mrb[0].mxu0
    %v1352 = vadd.f32 0.0, %v1351
    %v1353 = vpop.f32.mrb[0].mxu0
    %1354 = vmatprep.mubr.bf16.mxu0 0
    %1355 = vmatmul.mubr.bf16.gmra.mrb[0].mxu0 %v1312
    %v1356 = vpop.f32.mrb[0].mxu0
    %v1357 = vadd.f32 0.0, %v1356
    %v1358 = vpop.f32.mrb[0].mxu0
    %v1359 = vpop.f32.mrb[0].mxu0
    %v1360 = vadd.f32 0.0, %v1359
    %v1361 = vpop.f32.mrb[0].mxu0
    %1362 = vdwg.mxu0
    %v1363 = vadd.f32 %v1282, %v1349
    %v1364 = vadd.f32 %v1285, %v1352
    %v1365 = vadd.f32 %v1290, %v1357
    %v1366 = vadd.f32 %v1293, %v1360
    %v1367 = vlaneseq
    %v1368 = vshrl.u32 %v1367, 7
    %v1369 = vsub.s32 4, %v1368
    %v1370 = vrot.slane %v777, %v1369
    %v1371 = vadd.f32 %v1363, %v1370
    %v1372 = vadd.f32 %v1364, %v1370
    %v1373 = vadd.f32 %v1365, %v1370
    %v1374 = vadd.f32 %v1366, %v1370
    %v1375 = vsel %vm74, %v1371, 0.0
    %1376 = vadd.xlane.f32.xlu0 %v1375
    %v1377 = vpop.xlane.xlu0 %1376
    %v1378 = vsel %vm74, %v1372, 0.0
    %1379 = vadd.xlane.f32.xlu0 %v1378
    %v1380 = vpop.xlane.xlu0 %1379
    %v1381 = vsel %vm74, %v1373, 0.0
    %1382 = vadd.xlane.f32.xlu0 %v1381
    %v1383 = vpop.xlane.xlu0 %1382
    %v1384 = vsel %vm74, %v1374, 0.0
    %1385 = vadd.xlane.f32.xlu0 %v1384
    %v1386 = vpop.xlane.xlu0 %1385
    %v1387 = vmul.f32 %v1377, %v365
    %v1388 = vmul.f32 %v1380, %v365
    %v1389 = vmul.f32 %v1383, %v365
    %v1390 = vmul.f32 %v1386, %v365
    %v1391 = vsub.f32 %v1371, %v1387
    %v1392 = vsub.f32 %v1372, %v1388
    %v1393 = vsub.f32 %v1373, %v1389
    %v1394 = vsub.f32 %v1374, %v1390
    %v1395 = vmul.f32 %v1391, %v1391
    %v1396 = vmul.f32 %v1392, %v1392
    %v1397 = vmul.f32 %v1393, %v1393
    %v1398 = vmul.f32 %v1394, %v1394
    %v1399 = vsel %vm74, %v1395, 0.0
    %1400 = vadd.xlane.f32.xlu0 %v1399
    %v1401 = vpop.xlane.xlu0 %1400
    %v1402 = vsel %vm74, %v1396, 0.0
    %1403 = vadd.xlane.f32.xlu0 %v1402
    %v1404 = vpop.xlane.xlu0 %1403
    %v1405 = vsel %vm74, %v1397, 0.0
    %1406 = vadd.xlane.f32.xlu0 %v1405
    %v1407 = vpop.xlane.xlu0 %1406
    %v1408 = vsel %vm74, %v1398, 0.0
    %1409 = vadd.xlane.f32.xlu0 %v1408
    %v1410 = vpop.xlane.xlu0 %1409
    %v1411 = vmul.f32 %v1401, %v365
    %v1412 = vmul.f32 %v1404, %v365
    %v1413 = vmul.f32 %v1407, %v365
    %v1414 = vmul.f32 %v1410, %v365
    %v1415 = vadd.f32 %v1411, 1e-08
    %v1416 = vadd.f32 %v1412, 1e-08
    %v1417 = vadd.f32 %v1413, 1e-08
    %v1418 = vadd.f32 %v1414, 1e-08
    %v1419 = vrsqrt.pop %v1415
    %v1420 = vrsqrt.pop %v1416
    %v1421 = vrsqrt.pop %v1417
    %v1422 = vrsqrt.pop %v1418
    %v1423 = vmul.f32 %v1391, %v1419
    %v1424 = vmul.f32 %v1392, %v1420
    %v1425 = vmul.f32 %v1393, %v1421
    %v1426 = vmul.f32 %v1394, %v1422
    %v1427 = vlaneseq
    %v1428 = vshrl.u32 %v1427, 7
    %v1429 = vsub.s32 5, %v1428
    %v1430 = vrot.slane %v777, %v1429
    %v1431 = vmul.f32 %v1423, %v1430
    %v1432 = vmul.f32 %v1424, %v1430
    %v1433 = vmul.f32 %v1425, %v1430
    %v1434 = vmul.f32 %v1426, %v1430
    %v1435 = vlaneseq
    %v1436 = vshrl.u32 %v1435, 7
    %v1437 = vsub.s32 6, %v1436
    %v1438 = vrot.slane %v777, %v1437
    %v1439 = vadd.f32 %v1431, %v1438
    %v1440 = vadd.f32 %v1432, %v1438
    %v1441 = vadd.f32 %v1433, %v1438
    %v1442 = vadd.f32 %v1434, %v1438
    %v1443 = vmax.f32 %v1439, 0.0
    %v1444 = vmax.f32 %v1440, 0.0
    %v1445 = vmax.f32 %v1441, 0.0
    %v1446 = vmax.f32 %v1442, 0.0
    %v1447 = vlaneseq
    %v1448 = vshrl.u32 %v1447, 7
    %v1449 = vsub.s32 7, %v1448
    %v1450 = vrot.slane %v777, %v1449
    %v1451 = vmul.f32 %v1443, %v1450
    %v1452 = vmul.f32 %v1444, %v1450
    %v1453 = vmul.f32 %v1445, %v1450
    %v1454 = vmul.f32 %v1446, %v1450
    %v1455 = vadd.f32 %v1451, %v772
    %v1456 = vadd.f32 %v1452, %v773
    %v1457 = vadd.f32 %v1453, %v774
    %v1458 = vadd.f32 %v1454, %v775
    %v1459 = vpack.c.bf16 %v1456, %v1455
    %v1460 = vpack.c.bf16 %v1458, %v1457
    %v1463 = vunpack.c.l.b16 %v1459
    %v1464 = vunpack.c.h.b16 %v1459
    %v1465 = vunpack.c.l.b16 %v1460
    %v1466 = vunpack.c.h.b16 %v1460
    %v1467 = vpack.c.b16 %v1463, %v1463
    %v1468 = vpack.c.b16 %v1464, %v1464
    %v1469 = vpack.c.b16 %v1465, %v1465
    %v1470 = vpack.c.b16 %v1466, %v1466
    %vm1475 = vcmask 257024
    %1476 = vst.msk [vmem:[#allocation11] sm:$0xf] %vm1475, %v1467
    %1477 = vst.msk [vmem:[#allocation11 + $0x4] sm:$0xf] %vm1475, %v1468
    %1478 = vst.msk [vmem:[#allocation11 + $0x8] sm:$0xf] %vm1475, %v1469
    %1479 = vst.msk [vmem:[#allocation11 + $0xc] sm:$0xf] %vm1475, %v1470
    // Predicated region
    $region34: #{tpu_custom_call.1} parent=1 // pred_check
      _
    $region35: #{tpu_custom_call.1} parent=1 // pred_check_branch
      %1481 = sbr.rel (0) target = $region37
    $region36: #{tpu_custom_call.1} parent=1 // pred_region
      %s1483 = ssub.s32 256, 256
      %1484 = vsyncadd [#allocation5], %s1483
      %s1485 = sshll.u32 [#allocation11], 4
      %s1486 = int_to_ptr.vmem [resolvable:$true] %s1485
      %1491 = dma.vmem_to_hbm [thread:$0]  %s1486, 256, %s4, [#allocation5], 64, 64, 4
    $region37: #{tpu_custom_call.1} parent=1 // pred_fallthru
      _
    // Predicated region
    $region38: #{tpu_custom_call.1} parent=1 // pred_check
      _
    $region39: #{tpu_custom_call.1} parent=1 // pred_check_branch
      %1493 = sbr.rel (0) target = $region41
    $region40: #{tpu_custom_call.1} parent=1 // pred_region
      %1494 = dma.done [#allocation5], 256
    $region41: #{tpu_custom_call.1} parent=1 // pred_fallthru
      _
    %1495 = vsyncpa [#allocation4], 1
    %1496 = vsyncpa [#allocation7], 1
    %1497 = vsyncpa [#allocation10], 1
    %1498 = vsyncpa [#allocation5], 1

</llo_original>
